<compile_context>
chip_gen: v5e
topology: v5e:2x2
jax: 0.10.0
libtpu: 0.0.40
codegen_flags: <defaults>
</compile_context>

<pallas_src>
import functools

import jax
import jax.numpy as jnp
from jax.experimental import pallas as pl
from jax.experimental.pallas import tpu as pltpu

K = 7            # conv kernel size
PAD = K // 2     # conv padding (3)


def _attn_kernel(w_ref, mask_ref, x_ref, o_ref, ext_ref, *, W, HW, R, BT):
    # w_ref    : SMEM (2*K*K,) f32 flattened Conv2d weight [in_ch, kh, kw]
    # mask_ref : VMEM (K, HW) f32 column-validity mask per kw tap
    # x_ref    : VMEM (BT, C, HW) input block (lane-dense flattened spatial)
    # o_ref    : VMEM (BT, C, HW) output block
    # ext_ref  : VMEM (2, HW + 2R) zero-extended flat [avg, max] pooled maps
    ext_ref[...] = jnp.zeros_like(ext_ref)   # zero pads (center overwritten below)

    for b in range(BT):
        xb = x_ref[b].astype(jnp.float32)                       # (C, HW)
        # Channel pooling; center write is lane-aligned (R multiple of 128).
        ext_ref[0:1, R:R + HW] = jnp.mean(xb, axis=0, keepdims=True)
        ext_ref[1:2, R:R + HW] = jnp.max(xb, axis=0, keepdims=True)

        # 7x7 conv over the 2-channel pooled stack, in flat coordinates.
        # Row out-of-range taps land in the zero extension; column wrap is
        # removed by the per-kw mask (applied once per kw, not per tap).
        acc = jnp.zeros((1, HW), jnp.float32)
        for kw in range(K):
            part = jnp.zeros((1, HW), jnp.float32)
            for kh in range(K):
                off = (kh - PAD) * W + (kw - PAD)
                s = ext_ref[:, R + off:R + off + HW]             # (2, HW)
                part = part + s[0:1] * w_ref[kh * K + kw] \
                            + s[1:2] * w_ref[K * K + kh * K + kw]
            acc = acc + part * mask_ref[kw:kw + 1, :]

        attn = jax.nn.sigmoid(acc)                               # (1, HW)
        # Re-read x for the multiply (avoids a long live range for large C).
        o_ref[b] = (x_ref[b].astype(jnp.float32) * attn).astype(o_ref.dtype)


def _pick_bt(B, C, HW, itemsize):
    per_b = max(1, C * HW * itemsize)
    bt = max(1, min(B, (2 << 20) // per_b))   # ~2 MiB input block target
    if bt >= B and B > 1:
        bt = max(1, B // 2)                    # keep >=2 grid steps (v7x megacore)
    while B % bt:
        bt -= 1
    return bt


def attention_block(x, weight):
    """CBAM spatial attention block.

    x      : (B, C, H, W)
    weight : (1, 2, K, K) Conv2d weight (out=1, in=2, bias=False)
    """
    B, C, H, W = x.shape
    HW = H * W
    R = ((PAD * W + PAD + 127) // 128) * 128   # lane-aligned zero extension
    bt = _pick_bt(B, C, HW, x.dtype.itemsize)

    x2 = x.reshape(B, C, HW)                   # free reshape of contiguous NCHW
    w_flat = weight.reshape(-1).astype(jnp.float32)   # (2*K*K,)

    # Per-kw column-validity masks (tiny, computed once in the wrapper).
    j = jnp.arange(HW, dtype=jnp.int32) % W    # column index of each flat position
    masks = jnp.stack(
        [((j >= PAD - kw) & (j < W + PAD - kw)).astype(jnp.float32)
         for kw in range(K)], axis=0)          # (K, HW)

    kernel = functools.partial(_attn_kernel, W=W, HW=HW, R=R, BT=bt)
    block_bytes = bt * C * HW * x.dtype.itemsize
    vmem_limit = int(min(128 << 20, max(32 << 20, 6 * block_bytes + (2 << 20))))

    # TODO(synk): for very large C*H*W (single-batch block >> VMEM on v7x) chunk C
    # with a second grid axis (pooled-map reduction pass + lane-dense multiply pass).
    out2 = pl.pallas_call(
        kernel,
        out_shape=jax.ShapeDtypeStruct((B, C, HW), x.dtype),
        grid=(B // bt,),
        in_specs=[
            pl.BlockSpec(memory_space=pltpu.MemorySpace.SMEM),       # conv weights
            pl.BlockSpec((K, HW), lambda i: (0, 0)),                 # column masks
            pl.BlockSpec((bt, C, HW), lambda i: (i, 0, 0)),          # x (lane-dense)
        ],
        out_specs=pl.BlockSpec((bt, C, HW), lambda i: (i, 0, 0)),
        scratch_shapes=[pltpu.VMEM((2, HW + 2 * R), jnp.float32)],
        compiler_params=pltpu.CompilerParams(
            dimension_semantics=("parallel",),
            vmem_limit_bytes=vmem_limit),
    )(w_flat, masks, x2)
    return out2.reshape(B, C, H, W)


def _reference(x, weight):
    avg = jnp.mean(x, axis=1, keepdims=True)
    mx = jnp.max(x, axis=1, keepdims=True)
    concat = jnp.concatenate([avg, mx], axis=1)
    conv = jax.lax.conv_general_dilated(
        concat, weight, window_strides=(1, 1),
        padding=[(PAD, PAD), (PAD, PAD)],
        dimension_numbers=("NCHW", "OIHW", "NCHW"))
    return x * jax.nn.sigmoid(conv)


if __name__ == "__main__":
    key = jax.random.PRNGKey(0)
    kx, kw = jax.random.split(key)

    B, C, H, W = 2, 4, 16, 16
    x = jax.random.normal(kx, (B, C, H, W), dtype=jnp.float32)

    # Deterministic Conv2d(2 -> 1, k=7, bias=False) weight (PyTorch-style uniform
    # bound = 1/sqrt(fan_in), fan_in = 2*7*7).
    fan_in = 2 * K * K
    bound = 1.0 / (fan_in ** 0.5)
    weight = jax.random.uniform(kw, (1, 2, K, K), dtype=jnp.float32,
                                minval=-bound, maxval=bound)

    out = attention_block(x, weight)
    jax.block_until_ready(out)

    ref = _reference(x, weight)
    assert out.shape == (B, C, H, W)
    assert jnp.allclose(out, ref, atol=1e-5, rtol=1e-5), "mismatch vs reference"
    print("KERNEL_OK")
</pallas_src>

<mosaic_0001>
module attributes {stable_mosaic.version = 11 : i64} {
  func.func @_attn_kernel(%arg0: i32, %arg1: memref<98xf32, #tpu.memory_space<smem>>, %arg2: memref<7x256xf32, #tpu.memory_space<vmem>>, %arg3: memref<1x4x256xf32, #tpu.memory_space<vmem>>, %arg4: memref<1x4x256xf32, #tpu.memory_space<vmem>>, %arg5: memref<2x512xf32, #tpu.memory_space<vmem>>) attributes {dimension_semantics = [#tpu.dimension_semantics<parallel>], iteration_bounds = array<i64: 2>, scalar_prefetch = 0 : i64, scratch_operands = 1 : i64, tpu.core_type = #tpu.core_type<tc>, window_params = [{transform_indices = @transform_0, window_bounds = array<i64: 98>}, {pipeline_mode = #tpu.pipeline_mode<synchronous>, transform_indices = @transform_1, window_bounds = array<i64: 7, 256>}, {transform_indices = @transform_2, window_bounds = array<i64: 1, 4, 256>}, {transform_indices = @transform_3, window_bounds = array<i64: 1, 4, 256>}]} {
    %cst = arith.constant 0.000000e+00 : f32
    %0 = vector.broadcast %cst : f32 to vector<2x512xf32>
    %c0 = arith.constant 0 : index
    %c0_0 = arith.constant 0 : index
    %1 = vector.load %arg5[%c0, %c0_0] : memref<2x512xf32, #tpu.memory_space<vmem>>, vector<2x512xf32>
    tpu.vector_store %arg5[%c0, %c0_0], %0 {strides = array<i32>} : memref<2x512xf32, #tpu.memory_space<vmem>>, vector<2x512xf32>,
    %c0_1 = arith.constant 0 : index
    %c0_2 = arith.constant 0 : index
    %c0_3 = arith.constant 0 : index
    %2 = vector.load %arg3[%c0_1, %c0_2, %c0_3] : memref<1x4x256xf32, #tpu.memory_space<vmem>>, vector<1x4x256xf32>
    %3 = vector.shape_cast %2 : vector<1x4x256xf32> to vector<4x256xf32>
    %cst_4 = arith.constant dense<0.000000e+00> : vector<256xf32>
    %4 = vector.multi_reduction <add>, %3, %cst_4 [0] : vector<4x256xf32> to vector<256xf32>
    %5 = vector.shape_cast %4 : vector<256xf32> to vector<1x256xf32>
    %cst_5 = arith.constant 4.000000e+00 : f32
    %6 = vector.broadcast %cst_5 : f32 to vector<1x256xf32>
    %7 = arith.divf %5, %6 : vector<1x256xf32>
    %c0_6 = arith.constant 0 : index
    %c128 = arith.constant 128 : index
    %8 = vector.load %arg5[%c0_6, %c128] : memref<2x512xf32, #tpu.memory_space<vmem>>, vector<1x256xf32>
    tpu.vector_store %arg5[%c0_6, %c128], %7 {strides = array<i32>} : memref<2x512xf32, #tpu.memory_space<vmem>>, vector<1x256xf32>,
    %cst_7 = arith.constant dense<0xFF800000> : vector<256xf32>
    %9 = vector.multi_reduction <maximumf>, %3, %cst_7 [0] : vector<4x256xf32> to vector<256xf32>
    %10 = vector.shape_cast %9 : vector<256xf32> to vector<1x256xf32>
    %c1 = arith.constant 1 : index
    %c128_8 = arith.constant 128 : index
    %11 = vector.load %arg5[%c1, %c128_8] : memref<2x512xf32, #tpu.memory_space<vmem>>, vector<1x256xf32>
    tpu.vector_store %arg5[%c1, %c128_8], %10 {strides = array<i32>} : memref<2x512xf32, #tpu.memory_space<vmem>>, vector<1x256xf32>,
    %cst_9 = arith.constant 0.000000e+00 : f32
    %12 = vector.broadcast %cst_9 : f32 to vector<1x256xf32>
    %cst_10 = arith.constant 0.000000e+00 : f32
    %13 = vector.broadcast %cst_10 : f32 to vector<1x256xf32>
    %c0_11 = arith.constant 0 : index
    %c77 = arith.constant 77 : index
    %14 = vector.load %arg5[%c0_11, %c77] : memref<2x512xf32, #tpu.memory_space<vmem>>, vector<2x256xf32>
    %15 = vector.extract_strided_slice %14 {offsets = [0, 0], sizes = [1, 256], strides = [1, 1]} : vector<2x256xf32> to vector<1x256xf32>
    %c0_12 = arith.constant 0 : index
    %16 = memref.load %arg1[%c0_12] : memref<98xf32, #tpu.memory_space<smem>>
    %17 = vector.broadcast %16 : f32 to vector<1x256xf32>
    %18 = arith.mulf %15, %17 : vector<1x256xf32>
    %19 = arith.addf %13, %18 : vector<1x256xf32>
    %20 = vector.extract_strided_slice %14 {offsets = [1, 0], sizes = [1, 256], strides = [1, 1]} : vector<2x256xf32> to vector<1x256xf32>
    %c49 = arith.constant 49 : index
    %21 = memref.load %arg1[%c49] : memref<98xf32, #tpu.memory_space<smem>>
    %22 = vector.broadcast %21 : f32 to vector<1x256xf32>
    %23 = arith.mulf %20, %22 : vector<1x256xf32>
    %24 = arith.addf %19, %23 : vector<1x256xf32>
    %c0_13 = arith.constant 0 : index
    %c93 = arith.constant 93 : index
    %25 = vector.load %arg5[%c0_13, %c93] : memref<2x512xf32, #tpu.memory_space<vmem>>, vector<2x256xf32>
    %26 = vector.extract_strided_slice %25 {offsets = [0, 0], sizes = [1, 256], strides = [1, 1]} : vector<2x256xf32> to vector<1x256xf32>
    %c7 = arith.constant 7 : index
    %27 = memref.load %arg1[%c7] : memref<98xf32, #tpu.memory_space<smem>>
    %28 = vector.broadcast %27 : f32 to vector<1x256xf32>
    %29 = arith.mulf %26, %28 : vector<1x256xf32>
    %30 = arith.addf %24, %29 : vector<1x256xf32>
    %31 = vector.extract_strided_slice %25 {offsets = [1, 0], sizes = [1, 256], strides = [1, 1]} : vector<2x256xf32> to vector<1x256xf32>
    %c56 = arith.constant 56 : index
    %32 = memref.load %arg1[%c56] : memref<98xf32, #tpu.memory_space<smem>>
    %33 = vector.broadcast %32 : f32 to vector<1x256xf32>
    %34 = arith.mulf %31, %33 : vector<1x256xf32>
    %35 = arith.addf %30, %34 : vector<1x256xf32>
    %c0_14 = arith.constant 0 : index
    %c109 = arith.constant 109 : index
    %36 = vector.load %arg5[%c0_14, %c109] : memref<2x512xf32, #tpu.memory_space<vmem>>, vector<2x256xf32>
    %37 = vector.extract_strided_slice %36 {offsets = [0, 0], sizes = [1, 256], strides = [1, 1]} : vector<2x256xf32> to vector<1x256xf32>
    %c14 = arith.constant 14 : index
    %38 = memref.load %arg1[%c14] : memref<98xf32, #tpu.memory_space<smem>>
    %39 = vector.broadcast %38 : f32 to vector<1x256xf32>
    %40 = arith.mulf %37, %39 : vector<1x256xf32>
    %41 = arith.addf %35, %40 : vector<1x256xf32>
    %42 = vector.extract_strided_slice %36 {offsets = [1, 0], sizes = [1, 256], strides = [1, 1]} : vector<2x256xf32> to vector<1x256xf32>
    %c63 = arith.constant 63 : index
    %43 = memref.load %arg1[%c63] : memref<98xf32, #tpu.memory_space<smem>>
    %44 = vector.broadcast %43 : f32 to vector<1x256xf32>
    %45 = arith.mulf %42, %44 : vector<1x256xf32>
    %46 = arith.addf %41, %45 : vector<1x256xf32>
    %c0_15 = arith.constant 0 : index
    %c125 = arith.constant 125 : index
    %47 = vector.load %arg5[%c0_15, %c125] : memref<2x512xf32, #tpu.memory_space<vmem>>, vector<2x256xf32>
    %48 = vector.extract_strided_slice %47 {offsets = [0, 0], sizes = [1, 256], strides = [1, 1]} : vector<2x256xf32> to vector<1x256xf32>
    %c21 = arith.constant 21 : index
    %49 = memref.load %arg1[%c21] : memref<98xf32, #tpu.memory_space<smem>>
    %50 = vector.broadcast %49 : f32 to vector<1x256xf32>
    %51 = arith.mulf %48, %50 : vector<1x256xf32>
    %52 = arith.addf %46, %51 : vector<1x256xf32>
    %53 = vector.extract_strided_slice %47 {offsets = [1, 0], sizes = [1, 256], strides = [1, 1]} : vector<2x256xf32> to vector<1x256xf32>
    %c70 = arith.constant 70 : index
    %54 = memref.load %arg1[%c70] : memref<98xf32, #tpu.memory_space<smem>>
    %55 = vector.broadcast %54 : f32 to vector<1x256xf32>
    %56 = arith.mulf %53, %55 : vector<1x256xf32>
    %57 = arith.addf %52, %56 : vector<1x256xf32>
    %c0_16 = arith.constant 0 : index
    %c141 = arith.constant 141 : index
    %58 = vector.load %arg5[%c0_16, %c141] : memref<2x512xf32, #tpu.memory_space<vmem>>, vector<2x256xf32>
    %59 = vector.extract_strided_slice %58 {offsets = [0, 0], sizes = [1, 256], strides = [1, 1]} : vector<2x256xf32> to vector<1x256xf32>
    %c28 = arith.constant 28 : index
    %60 = memref.load %arg1[%c28] : memref<98xf32, #tpu.memory_space<smem>>
    %61 = vector.broadcast %60 : f32 to vector<1x256xf32>
    %62 = arith.mulf %59, %61 : vector<1x256xf32>
    %63 = arith.addf %57, %62 : vector<1x256xf32>
    %64 = vector.extract_strided_slice %58 {offsets = [1, 0], sizes = [1, 256], strides = [1, 1]} : vector<2x256xf32> to vector<1x256xf32>
    %c77_17 = arith.constant 77 : index
    %65 = memref.load %arg1[%c77_17] : memref<98xf32, #tpu.memory_space<smem>>
    %66 = vector.broadcast %65 : f32 to vector<1x256xf32>
    %67 = arith.mulf %64, %66 : vector<1x256xf32>
    %68 = arith.addf %63, %67 : vector<1x256xf32>
    %c0_18 = arith.constant 0 : index
    %c157 = arith.constant 157 : index
    %69 = vector.load %arg5[%c0_18, %c157] : memref<2x512xf32, #tpu.memory_space<vmem>>, vector<2x256xf32>
    %70 = vector.extract_strided_slice %69 {offsets = [0, 0], sizes = [1, 256], strides = [1, 1]} : vector<2x256xf32> to vector<1x256xf32>
    %c35 = arith.constant 35 : index
    %71 = memref.load %arg1[%c35] : memref<98xf32, #tpu.memory_space<smem>>
    %72 = vector.broadcast %71 : f32 to vector<1x256xf32>
    %73 = arith.mulf %70, %72 : vector<1x256xf32>
    %74 = arith.addf %68, %73 : vector<1x256xf32>
    %75 = vector.extract_strided_slice %69 {offsets = [1, 0], sizes = [1, 256], strides = [1, 1]} : vector<2x256xf32> to vector<1x256xf32>
    %c84 = arith.constant 84 : index
    %76 = memref.load %arg1[%c84] : memref<98xf32, #tpu.memory_space<smem>>
    %77 = vector.broadcast %76 : f32 to vector<1x256xf32>
    %78 = arith.mulf %75, %77 : vector<1x256xf32>
    %79 = arith.addf %74, %78 : vector<1x256xf32>
    %c0_19 = arith.constant 0 : index
    %c173 = arith.constant 173 : index
    %80 = vector.load %arg5[%c0_19, %c173] : memref<2x512xf32, #tpu.memory_space<vmem>>, vector<2x256xf32>
    %81 = vector.extract_strided_slice %80 {offsets = [0, 0], sizes = [1, 256], strides = [1, 1]} : vector<2x256xf32> to vector<1x256xf32>
    %c42 = arith.constant 42 : index
    %82 = memref.load %arg1[%c42] : memref<98xf32, #tpu.memory_space<smem>>
    %83 = vector.broadcast %82 : f32 to vector<1x256xf32>
    %84 = arith.mulf %81, %83 : vector<1x256xf32>
    %85 = arith.addf %79, %84 : vector<1x256xf32>
    %86 = vector.extract_strided_slice %80 {offsets = [1, 0], sizes = [1, 256], strides = [1, 1]} : vector<2x256xf32> to vector<1x256xf32>
    %c91 = arith.constant 91 : index
    %87 = memref.load %arg1[%c91] : memref<98xf32, #tpu.memory_space<smem>>
    %88 = vector.broadcast %87 : f32 to vector<1x256xf32>
    %89 = arith.mulf %86, %88 : vector<1x256xf32>
    %90 = arith.addf %85, %89 : vector<1x256xf32>
    %c0_20 = arith.constant 0 : index
    %c0_21 = arith.constant 0 : index
    %91 = vector.load %arg2[%c0_20, %c0_21] : memref<7x256xf32, #tpu.memory_space<vmem>>, vector<1x256xf32>
    %92 = arith.mulf %90, %91 : vector<1x256xf32>
    %93 = arith.addf %12, %92 : vector<1x256xf32>
    %cst_22 = arith.constant 0.000000e+00 : f32
    %94 = vector.broadcast %cst_22 : f32 to vector<1x256xf32>
    %c0_23 = arith.constant 0 : index
    %c78 = arith.constant 78 : index
    %95 = vector.load %arg5[%c0_23, %c78] : memref<2x512xf32, #tpu.memory_space<vmem>>, vector<2x256xf32>
    %96 = vector.extract_strided_slice %95 {offsets = [0, 0], sizes = [1, 256], strides = [1, 1]} : vector<2x256xf32> to vector<1x256xf32>
    %c1_24 = arith.constant 1 : index
    %97 = memref.load %arg1[%c1_24] : memref<98xf32, #tpu.memory_space<smem>>
    %98 = vector.broadcast %97 : f32 to vector<1x256xf32>
    %99 = arith.mulf %96, %98 : vector<1x256xf32>
    %100 = arith.addf %94, %99 : vector<1x256xf32>
    %101 = vector.extract_strided_slice %95 {offsets = [1, 0], sizes = [1, 256], strides = [1, 1]} : vector<2x256xf32> to vector<1x256xf32>
    %c50 = arith.constant 50 : index
    %102 = memref.load %arg1[%c50] : memref<98xf32, #tpu.memory_space<smem>>
    %103 = vector.broadcast %102 : f32 to vector<1x256xf32>
    %104 = arith.mulf %101, %103 : vector<1x256xf32>
    %105 = arith.addf %100, %104 : vector<1x256xf32>
    %c0_25 = arith.constant 0 : index
    %c94 = arith.constant 94 : index
    %106 = vector.load %arg5[%c0_25, %c94] : memref<2x512xf32, #tpu.memory_space<vmem>>, vector<2x256xf32>
    %107 = vector.extract_strided_slice %106 {offsets = [0, 0], sizes = [1, 256], strides = [1, 1]} : vector<2x256xf32> to vector<1x256xf32>
    %c8 = arith.constant 8 : index
    %108 = memref.load %arg1[%c8] : memref<98xf32, #tpu.memory_space<smem>>
    %109 = vector.broadcast %108 : f32 to vector<1x256xf32>
    %110 = arith.mulf %107, %109 : vector<1x256xf32>
    %111 = arith.addf %105, %110 : vector<1x256xf32>
    %112 = vector.extract_strided_slice %106 {offsets = [1, 0], sizes = [1, 256], strides = [1, 1]} : vector<2x256xf32> to vector<1x256xf32>
    %c57 = arith.constant 57 : index
    %113 = memref.load %arg1[%c57] : memref<98xf32, #tpu.memory_space<smem>>
    %114 = vector.broadcast %113 : f32 to vector<1x256xf32>
    %115 = arith.mulf %112, %114 : vector<1x256xf32>
    %116 = arith.addf %111, %115 : vector<1x256xf32>
    %c0_26 = arith.constant 0 : index
    %c110 = arith.constant 110 : index
    %117 = vector.load %arg5[%c0_26, %c110] : memref<2x512xf32, #tpu.memory_space<vmem>>, vector<2x256xf32>
    %118 = vector.extract_strided_slice %117 {offsets = [0, 0], sizes = [1, 256], strides = [1, 1]} : vector<2x256xf32> to vector<1x256xf32>
    %c15 = arith.constant 15 : index
    %119 = memref.load %arg1[%c15] : memref<98xf32, #tpu.memory_space<smem>>
    %120 = vector.broadcast %119 : f32 to vector<1x256xf32>
    %121 = arith.mulf %118, %120 : vector<1x256xf32>
    %122 = arith.addf %116, %121 : vector<1x256xf32>
    %123 = vector.extract_strided_slice %117 {offsets = [1, 0], sizes = [1, 256], strides = [1, 1]} : vector<2x256xf32> to vector<1x256xf32>
    %c64 = arith.constant 64 : index
    %124 = memref.load %arg1[%c64] : memref<98xf32, #tpu.memory_space<smem>>
    %125 = vector.broadcast %124 : f32 to vector<1x256xf32>
    %126 = arith.mulf %123, %125 : vector<1x256xf32>
    %127 = arith.addf %122, %126 : vector<1x256xf32>
    %c0_27 = arith.constant 0 : index
    %c126 = arith.constant 126 : index
    %128 = vector.load %arg5[%c0_27, %c126] : memref<2x512xf32, #tpu.memory_space<vmem>>, vector<2x256xf32>
    %129 = vector.extract_strided_slice %128 {offsets = [0, 0], sizes = [1, 256], strides = [1, 1]} : vector<2x256xf32> to vector<1x256xf32>
    %c22 = arith.constant 22 : index
    %130 = memref.load %arg1[%c22] : memref<98xf32, #tpu.memory_space<smem>>
    %131 = vector.broadcast %130 : f32 to vector<1x256xf32>
    %132 = arith.mulf %129, %131 : vector<1x256xf32>
    %133 = arith.addf %127, %132 : vector<1x256xf32>
    %134 = vector.extract_strided_slice %128 {offsets = [1, 0], sizes = [1, 256], strides = [1, 1]} : vector<2x256xf32> to vector<1x256xf32>
    %c71 = arith.constant 71 : index
    %135 = memref.load %arg1[%c71] : memref<98xf32, #tpu.memory_space<smem>>
    %136 = vector.broadcast %135 : f32 to vector<1x256xf32>
    %137 = arith.mulf %134, %136 : vector<1x256xf32>
    %138 = arith.addf %133, %137 : vector<1x256xf32>
    %c0_28 = arith.constant 0 : index
    %c142 = arith.constant 142 : index
    %139 = vector.load %arg5[%c0_28, %c142] : memref<2x512xf32, #tpu.memory_space<vmem>>, vector<2x256xf32>
    %140 = vector.extract_strided_slice %139 {offsets = [0, 0], sizes = [1, 256], strides = [1, 1]} : vector<2x256xf32> to vector<1x256xf32>
    %c29 = arith.constant 29 : index
    %141 = memref.load %arg1[%c29] : memref<98xf32, #tpu.memory_space<smem>>
    %142 = vector.broadcast %141 : f32 to vector<1x256xf32>
    %143 = arith.mulf %140, %142 : vector<1x256xf32>
    %144 = arith.addf %138, %143 : vector<1x256xf32>
    %145 = vector.extract_strided_slice %139 {offsets = [1, 0], sizes = [1, 256], strides = [1, 1]} : vector<2x256xf32> to vector<1x256xf32>
    %c78_29 = arith.constant 78 : index
    %146 = memref.load %arg1[%c78_29] : memref<98xf32, #tpu.memory_space<smem>>
    %147 = vector.broadcast %146 : f32 to vector<1x256xf32>
    %148 = arith.mulf %145, %147 : vector<1x256xf32>
    %149 = arith.addf %144, %148 : vector<1x256xf32>
    %c0_30 = arith.constant 0 : index
    %c158 = arith.constant 158 : index
    %150 = vector.load %arg5[%c0_30, %c158] : memref<2x512xf32, #tpu.memory_space<vmem>>, vector<2x256xf32>
    %151 = vector.extract_strided_slice %150 {offsets = [0, 0], sizes = [1, 256], strides = [1, 1]} : vector<2x256xf32> to vector<1x256xf32>
    %c36 = arith.constant 36 : index
    %152 = memref.load %arg1[%c36] : memref<98xf32, #tpu.memory_space<smem>>
    %153 = vector.broadcast %152 : f32 to vector<1x256xf32>
    %154 = arith.mulf %151, %153 : vector<1x256xf32>
    %155 = arith.addf %149, %154 : vector<1x256xf32>
    %156 = vector.extract_strided_slice %150 {offsets = [1, 0], sizes = [1, 256], strides = [1, 1]} : vector<2x256xf32> to vector<1x256xf32>
    %c85 = arith.constant 85 : index
    %157 = memref.load %arg1[%c85] : memref<98xf32, #tpu.memory_space<smem>>
    %158 = vector.broadcast %157 : f32 to vector<1x256xf32>
    %159 = arith.mulf %156, %158 : vector<1x256xf32>
    %160 = arith.addf %155, %159 : vector<1x256xf32>
    %c0_31 = arith.constant 0 : index
    %c174 = arith.constant 174 : index
    %161 = vector.load %arg5[%c0_31, %c174] : memref<2x512xf32, #tpu.memory_space<vmem>>, vector<2x256xf32>
    %162 = vector.extract_strided_slice %161 {offsets = [0, 0], sizes = [1, 256], strides = [1, 1]} : vector<2x256xf32> to vector<1x256xf32>
    %c43 = arith.constant 43 : index
    %163 = memref.load %arg1[%c43] : memref<98xf32, #tpu.memory_space<smem>>
    %164 = vector.broadcast %163 : f32 to vector<1x256xf32>
    %165 = arith.mulf %162, %164 : vector<1x256xf32>
    %166 = arith.addf %160, %165 : vector<1x256xf32>
    %167 = vector.extract_strided_slice %161 {offsets = [1, 0], sizes = [1, 256], strides = [1, 1]} : vector<2x256xf32> to vector<1x256xf32>
    %c92 = arith.constant 92 : index
    %168 = memref.load %arg1[%c92] : memref<98xf32, #tpu.memory_space<smem>>
    %169 = vector.broadcast %168 : f32 to vector<1x256xf32>
    %170 = arith.mulf %167, %169 : vector<1x256xf32>
    %171 = arith.addf %166, %170 : vector<1x256xf32>
    %c1_32 = arith.constant 1 : index
    %c0_33 = arith.constant 0 : index
    %172 = vector.load %arg2[%c1_32, %c0_33] : memref<7x256xf32, #tpu.memory_space<vmem>>, vector<1x256xf32>
    %173 = arith.mulf %171, %172 : vector<1x256xf32>
    %174 = arith.addf %93, %173 : vector<1x256xf32>
    %cst_34 = arith.constant 0.000000e+00 : f32
    %175 = vector.broadcast %cst_34 : f32 to vector<1x256xf32>
    %c0_35 = arith.constant 0 : index
    %c79 = arith.constant 79 : index
    %176 = vector.load %arg5[%c0_35, %c79] : memref<2x512xf32, #tpu.memory_space<vmem>>, vector<2x256xf32>
    %177 = vector.extract_strided_slice %176 {offsets = [0, 0], sizes = [1, 256], strides = [1, 1]} : vector<2x256xf32> to vector<1x256xf32>
    %c2 = arith.constant 2 : index
    %178 = memref.load %arg1[%c2] : memref<98xf32, #tpu.memory_space<smem>>
    %179 = vector.broadcast %178 : f32 to vector<1x256xf32>
    %180 = arith.mulf %177, %179 : vector<1x256xf32>
    %181 = arith.addf %175, %180 : vector<1x256xf32>
    %182 = vector.extract_strided_slice %176 {offsets = [1, 0], sizes = [1, 256], strides = [1, 1]} : vector<2x256xf32> to vector<1x256xf32>
    %c51 = arith.constant 51 : index
    %183 = memref.load %arg1[%c51] : memref<98xf32, #tpu.memory_space<smem>>
    %184 = vector.broadcast %183 : f32 to vector<1x256xf32>
    %185 = arith.mulf %182, %184 : vector<1x256xf32>
    %186 = arith.addf %181, %185 : vector<1x256xf32>
    %c0_36 = arith.constant 0 : index
    %c95 = arith.constant 95 : index
    %187 = vector.load %arg5[%c0_36, %c95] : memref<2x512xf32, #tpu.memory_space<vmem>>, vector<2x256xf32>
    %188 = vector.extract_strided_slice %187 {offsets = [0, 0], sizes = [1, 256], strides = [1, 1]} : vector<2x256xf32> to vector<1x256xf32>
    %c9 = arith.constant 9 : index
    %189 = memref.load %arg1[%c9] : memref<98xf32, #tpu.memory_space<smem>>
    %190 = vector.broadcast %189 : f32 to vector<1x256xf32>
    %191 = arith.mulf %188, %190 : vector<1x256xf32>
    %192 = arith.addf %186, %191 : vector<1x256xf32>
    %193 = vector.extract_strided_slice %187 {offsets = [1, 0], sizes = [1, 256], strides = [1, 1]} : vector<2x256xf32> to vector<1x256xf32>
    %c58 = arith.constant 58 : index
    %194 = memref.load %arg1[%c58] : memref<98xf32, #tpu.memory_space<smem>>
    %195 = vector.broadcast %194 : f32 to vector<1x256xf32>
    %196 = arith.mulf %193, %195 : vector<1x256xf32>
    %197 = arith.addf %192, %196 : vector<1x256xf32>
    %c0_37 = arith.constant 0 : index
    %c111 = arith.constant 111 : index
    %198 = vector.load %arg5[%c0_37, %c111] : memref<2x512xf32, #tpu.memory_space<vmem>>, vector<2x256xf32>
    %199 = vector.extract_strided_slice %198 {offsets = [0, 0], sizes = [1, 256], strides = [1, 1]} : vector<2x256xf32> to vector<1x256xf32>
    %c16 = arith.constant 16 : index
    %200 = memref.load %arg1[%c16] : memref<98xf32, #tpu.memory_space<smem>>
    %201 = vector.broadcast %200 : f32 to vector<1x256xf32>
    %202 = arith.mulf %199, %201 : vector<1x256xf32>
    %203 = arith.addf %197, %202 : vector<1x256xf32>
    %204 = vector.extract_strided_slice %198 {offsets = [1, 0], sizes = [1, 256], strides = [1, 1]} : vector<2x256xf32> to vector<1x256xf32>
    %c65 = arith.constant 65 : index
    %205 = memref.load %arg1[%c65] : memref<98xf32, #tpu.memory_space<smem>>
    %206 = vector.broadcast %205 : f32 to vector<1x256xf32>
    %207 = arith.mulf %204, %206 : vector<1x256xf32>
    %208 = arith.addf %203, %207 : vector<1x256xf32>
    %c0_38 = arith.constant 0 : index
    %c127 = arith.constant 127 : index
    %209 = vector.load %arg5[%c0_38, %c127] : memref<2x512xf32, #tpu.memory_space<vmem>>, vector<2x256xf32>
    %210 = vector.extract_strided_slice %209 {offsets = [0, 0], sizes = [1, 256], strides = [1, 1]} : vector<2x256xf32> to vector<1x256xf32>
    %c23 = arith.constant 23 : index
    %211 = memref.load %arg1[%c23] : memref<98xf32, #tpu.memory_space<smem>>
    %212 = vector.broadcast %211 : f32 to vector<1x256xf32>
    %213 = arith.mulf %210, %212 : vector<1x256xf32>
    %214 = arith.addf %208, %213 : vector<1x256xf32>
    %215 = vector.extract_strided_slice %209 {offsets = [1, 0], sizes = [1, 256], strides = [1, 1]} : vector<2x256xf32> to vector<1x256xf32>
    %c72 = arith.constant 72 : index
    %216 = memref.load %arg1[%c72] : memref<98xf32, #tpu.memory_space<smem>>
    %217 = vector.broadcast %216 : f32 to vector<1x256xf32>
    %218 = arith.mulf %215, %217 : vector<1x256xf32>
    %219 = arith.addf %214, %218 : vector<1x256xf32>
    %c0_39 = arith.constant 0 : index
    %c143 = arith.constant 143 : index
    %220 = vector.load %arg5[%c0_39, %c143] : memref<2x512xf32, #tpu.memory_space<vmem>>, vector<2x256xf32>
    %221 = vector.extract_strided_slice %220 {offsets = [0, 0], sizes = [1, 256], strides = [1, 1]} : vector<2x256xf32> to vector<1x256xf32>
    %c30 = arith.constant 30 : index
    %222 = memref.load %arg1[%c30] : memref<98xf32, #tpu.memory_space<smem>>
    %223 = vector.broadcast %222 : f32 to vector<1x256xf32>
    %224 = arith.mulf %221, %223 : vector<1x256xf32>
    %225 = arith.addf %219, %224 : vector<1x256xf32>
    %226 = vector.extract_strided_slice %220 {offsets = [1, 0], sizes = [1, 256], strides = [1, 1]} : vector<2x256xf32> to vector<1x256xf32>
    %c79_40 = arith.constant 79 : index
    %227 = memref.load %arg1[%c79_40] : memref<98xf32, #tpu.memory_space<smem>>
    %228 = vector.broadcast %227 : f32 to vector<1x256xf32>
    %229 = arith.mulf %226, %228 : vector<1x256xf32>
    %230 = arith.addf %225, %229 : vector<1x256xf32>
    %c0_41 = arith.constant 0 : index
    %c159 = arith.constant 159 : index
    %231 = vector.load %arg5[%c0_41, %c159] : memref<2x512xf32, #tpu.memory_space<vmem>>, vector<2x256xf32>
    %232 = vector.extract_strided_slice %231 {offsets = [0, 0], sizes = [1, 256], strides = [1, 1]} : vector<2x256xf32> to vector<1x256xf32>
    %c37 = arith.constant 37 : index
    %233 = memref.load %arg1[%c37] : memref<98xf32, #tpu.memory_space<smem>>
    %234 = vector.broadcast %233 : f32 to vector<1x256xf32>
    %235 = arith.mulf %232, %234 : vector<1x256xf32>
    %236 = arith.addf %230, %235 : vector<1x256xf32>
    %237 = vector.extract_strided_slice %231 {offsets = [1, 0], sizes = [1, 256], strides = [1, 1]} : vector<2x256xf32> to vector<1x256xf32>
    %c86 = arith.constant 86 : index
    %238 = memref.load %arg1[%c86] : memref<98xf32, #tpu.memory_space<smem>>
    %239 = vector.broadcast %238 : f32 to vector<1x256xf32>
    %240 = arith.mulf %237, %239 : vector<1x256xf32>
    %241 = arith.addf %236, %240 : vector<1x256xf32>
    %c0_42 = arith.constant 0 : index
    %c175 = arith.constant 175 : index
    %242 = vector.load %arg5[%c0_42, %c175] : memref<2x512xf32, #tpu.memory_space<vmem>>, vector<2x256xf32>
    %243 = vector.extract_strided_slice %242 {offsets = [0, 0], sizes = [1, 256], strides = [1, 1]} : vector<2x256xf32> to vector<1x256xf32>
    %c44 = arith.constant 44 : index
    %244 = memref.load %arg1[%c44] : memref<98xf32, #tpu.memory_space<smem>>
    %245 = vector.broadcast %244 : f32 to vector<1x256xf32>
    %246 = arith.mulf %243, %245 : vector<1x256xf32>
    %247 = arith.addf %241, %246 : vector<1x256xf32>
    %248 = vector.extract_strided_slice %242 {offsets = [1, 0], sizes = [1, 256], strides = [1, 1]} : vector<2x256xf32> to vector<1x256xf32>
    %c93_43 = arith.constant 93 : index
    %249 = memref.load %arg1[%c93_43] : memref<98xf32, #tpu.memory_space<smem>>
    %250 = vector.broadcast %249 : f32 to vector<1x256xf32>
    %251 = arith.mulf %248, %250 : vector<1x256xf32>
    %252 = arith.addf %247, %251 : vector<1x256xf32>
    %c2_44 = arith.constant 2 : index
    %c0_45 = arith.constant 0 : index
    %253 = vector.load %arg2[%c2_44, %c0_45] : memref<7x256xf32, #tpu.memory_space<vmem>>, vector<1x256xf32>
    %254 = arith.mulf %252, %253 : vector<1x256xf32>
    %255 = arith.addf %174, %254 : vector<1x256xf32>
    %cst_46 = arith.constant 0.000000e+00 : f32
    %256 = vector.broadcast %cst_46 : f32 to vector<1x256xf32>
    %c0_47 = arith.constant 0 : index
    %c80 = arith.constant 80 : index
    %257 = vector.load %arg5[%c0_47, %c80] : memref<2x512xf32, #tpu.memory_space<vmem>>, vector<2x256xf32>
    %258 = vector.extract_strided_slice %257 {offsets = [0, 0], sizes = [1, 256], strides = [1, 1]} : vector<2x256xf32> to vector<1x256xf32>
    %c3 = arith.constant 3 : index
    %259 = memref.load %arg1[%c3] : memref<98xf32, #tpu.memory_space<smem>>
    %260 = vector.broadcast %259 : f32 to vector<1x256xf32>
    %261 = arith.mulf %258, %260 : vector<1x256xf32>
    %262 = arith.addf %256, %261 : vector<1x256xf32>
    %263 = vector.extract_strided_slice %257 {offsets = [1, 0], sizes = [1, 256], strides = [1, 1]} : vector<2x256xf32> to vector<1x256xf32>
    %c52 = arith.constant 52 : index
    %264 = memref.load %arg1[%c52] : memref<98xf32, #tpu.memory_space<smem>>
    %265 = vector.broadcast %264 : f32 to vector<1x256xf32>
    %266 = arith.mulf %263, %265 : vector<1x256xf32>
    %267 = arith.addf %262, %266 : vector<1x256xf32>
    %c0_48 = arith.constant 0 : index
    %c96 = arith.constant 96 : index
    %268 = vector.load %arg5[%c0_48, %c96] : memref<2x512xf32, #tpu.memory_space<vmem>>, vector<2x256xf32>
    %269 = vector.extract_strided_slice %268 {offsets = [0, 0], sizes = [1, 256], strides = [1, 1]} : vector<2x256xf32> to vector<1x256xf32>
    %c10 = arith.constant 10 : index
    %270 = memref.load %arg1[%c10] : memref<98xf32, #tpu.memory_space<smem>>
    %271 = vector.broadcast %270 : f32 to vector<1x256xf32>
    %272 = arith.mulf %269, %271 : vector<1x256xf32>
    %273 = arith.addf %267, %272 : vector<1x256xf32>
    %274 = vector.extract_strided_slice %268 {offsets = [1, 0], sizes = [1, 256], strides = [1, 1]} : vector<2x256xf32> to vector<1x256xf32>
    %c59 = arith.constant 59 : index
    %275 = memref.load %arg1[%c59] : memref<98xf32, #tpu.memory_space<smem>>
    %276 = vector.broadcast %275 : f32 to vector<1x256xf32>
    %277 = arith.mulf %274, %276 : vector<1x256xf32>
    %278 = arith.addf %273, %277 : vector<1x256xf32>
    %c0_49 = arith.constant 0 : index
    %c112 = arith.constant 112 : index
    %279 = vector.load %arg5[%c0_49, %c112] : memref<2x512xf32, #tpu.memory_space<vmem>>, vector<2x256xf32>
    %280 = vector.extract_strided_slice %279 {offsets = [0, 0], sizes = [1, 256], strides = [1, 1]} : vector<2x256xf32> to vector<1x256xf32>
    %c17 = arith.constant 17 : index
    %281 = memref.load %arg1[%c17] : memref<98xf32, #tpu.memory_space<smem>>
    %282 = vector.broadcast %281 : f32 to vector<1x256xf32>
    %283 = arith.mulf %280, %282 : vector<1x256xf32>
    %284 = arith.addf %278, %283 : vector<1x256xf32>
    %285 = vector.extract_strided_slice %279 {offsets = [1, 0], sizes = [1, 256], strides = [1, 1]} : vector<2x256xf32> to vector<1x256xf32>
    %c66 = arith.constant 66 : index
    %286 = memref.load %arg1[%c66] : memref<98xf32, #tpu.memory_space<smem>>
    %287 = vector.broadcast %286 : f32 to vector<1x256xf32>
    %288 = arith.mulf %285, %287 : vector<1x256xf32>
    %289 = arith.addf %284, %288 : vector<1x256xf32>
    %c0_50 = arith.constant 0 : index
    %c128_51 = arith.constant 128 : index
    %290 = vector.load %arg5[%c0_50, %c128_51] : memref<2x512xf32, #tpu.memory_space<vmem>>, vector<2x256xf32>
    %291 = vector.extract_strided_slice %290 {offsets = [0, 0], sizes = [1, 256], strides = [1, 1]} : vector<2x256xf32> to vector<1x256xf32>
    %c24 = arith.constant 24 : index
    %292 = memref.load %arg1[%c24] : memref<98xf32, #tpu.memory_space<smem>>
    %293 = vector.broadcast %292 : f32 to vector<1x256xf32>
    %294 = arith.mulf %291, %293 : vector<1x256xf32>
    %295 = arith.addf %289, %294 : vector<1x256xf32>
    %296 = vector.extract_strided_slice %290 {offsets = [1, 0], sizes = [1, 256], strides = [1, 1]} : vector<2x256xf32> to vector<1x256xf32>
    %c73 = arith.constant 73 : index
    %297 = memref.load %arg1[%c73] : memref<98xf32, #tpu.memory_space<smem>>
    %298 = vector.broadcast %297 : f32 to vector<1x256xf32>
    %299 = arith.mulf %296, %298 : vector<1x256xf32>
    %300 = arith.addf %295, %299 : vector<1x256xf32>
    %c0_52 = arith.constant 0 : index
    %c144 = arith.constant 144 : index
    %301 = vector.load %arg5[%c0_52, %c144] : memref<2x512xf32, #tpu.memory_space<vmem>>, vector<2x256xf32>
    %302 = vector.extract_strided_slice %301 {offsets = [0, 0], sizes = [1, 256], strides = [1, 1]} : vector<2x256xf32> to vector<1x256xf32>
    %c31 = arith.constant 31 : index
    %303 = memref.load %arg1[%c31] : memref<98xf32, #tpu.memory_space<smem>>
    %304 = vector.broadcast %303 : f32 to vector<1x256xf32>
    %305 = arith.mulf %302, %304 : vector<1x256xf32>
    %306 = arith.addf %300, %305 : vector<1x256xf32>
    %307 = vector.extract_strided_slice %301 {offsets = [1, 0], sizes = [1, 256], strides = [1, 1]} : vector<2x256xf32> to vector<1x256xf32>
    %c80_53 = arith.constant 80 : index
    %308 = memref.load %arg1[%c80_53] : memref<98xf32, #tpu.memory_space<smem>>
    %309 = vector.broadcast %308 : f32 to vector<1x256xf32>
    %310 = arith.mulf %307, %309 : vector<1x256xf32>
    %311 = arith.addf %306, %310 : vector<1x256xf32>
    %c0_54 = arith.constant 0 : index
    %c160 = arith.constant 160 : index
    %312 = vector.load %arg5[%c0_54, %c160] : memref<2x512xf32, #tpu.memory_space<vmem>>, vector<2x256xf32>
    %313 = vector.extract_strided_slice %312 {offsets = [0, 0], sizes = [1, 256], strides = [1, 1]} : vector<2x256xf32> to vector<1x256xf32>
    %c38 = arith.constant 38 : index
    %314 = memref.load %arg1[%c38] : memref<98xf32, #tpu.memory_space<smem>>
    %315 = vector.broadcast %314 : f32 to vector<1x256xf32>
    %316 = arith.mulf %313, %315 : vector<1x256xf32>
    %317 = arith.addf %311, %316 : vector<1x256xf32>
    %318 = vector.extract_strided_slice %312 {offsets = [1, 0], sizes = [1, 256], strides = [1, 1]} : vector<2x256xf32> to vector<1x256xf32>
    %c87 = arith.constant 87 : index
    %319 = memref.load %arg1[%c87] : memref<98xf32, #tpu.memory_space<smem>>
    %320 = vector.broadcast %319 : f32 to vector<1x256xf32>
    %321 = arith.mulf %318, %320 : vector<1x256xf32>
    %322 = arith.addf %317, %321 : vector<1x256xf32>
    %c0_55 = arith.constant 0 : index
    %c176 = arith.constant 176 : index
    %323 = vector.load %arg5[%c0_55, %c176] : memref<2x512xf32, #tpu.memory_space<vmem>>, vector<2x256xf32>
    %324 = vector.extract_strided_slice %323 {offsets = [0, 0], sizes = [1, 256], strides = [1, 1]} : vector<2x256xf32> to vector<1x256xf32>
    %c45 = arith.constant 45 : index
    %325 = memref.load %arg1[%c45] : memref<98xf32, #tpu.memory_space<smem>>
    %326 = vector.broadcast %325 : f32 to vector<1x256xf32>
    %327 = arith.mulf %324, %326 : vector<1x256xf32>
    %328 = arith.addf %322, %327 : vector<1x256xf32>
    %329 = vector.extract_strided_slice %323 {offsets = [1, 0], sizes = [1, 256], strides = [1, 1]} : vector<2x256xf32> to vector<1x256xf32>
    %c94_56 = arith.constant 94 : index
    %330 = memref.load %arg1[%c94_56] : memref<98xf32, #tpu.memory_space<smem>>
    %331 = vector.broadcast %330 : f32 to vector<1x256xf32>
    %332 = arith.mulf %329, %331 : vector<1x256xf32>
    %333 = arith.addf %328, %332 : vector<1x256xf32>
    %c3_57 = arith.constant 3 : index
    %c0_58 = arith.constant 0 : index
    %334 = vector.load %arg2[%c3_57, %c0_58] : memref<7x256xf32, #tpu.memory_space<vmem>>, vector<1x256xf32>
    %335 = arith.mulf %333, %334 : vector<1x256xf32>
    %336 = arith.addf %255, %335 : vector<1x256xf32>
    %cst_59 = arith.constant 0.000000e+00 : f32
    %337 = vector.broadcast %cst_59 : f32 to vector<1x256xf32>
    %c0_60 = arith.constant 0 : index
    %c81 = arith.constant 81 : index
    %338 = vector.load %arg5[%c0_60, %c81] : memref<2x512xf32, #tpu.memory_space<vmem>>, vector<2x256xf32>
    %339 = vector.extract_strided_slice %338 {offsets = [0, 0], sizes = [1, 256], strides = [1, 1]} : vector<2x256xf32> to vector<1x256xf32>
    %c4 = arith.constant 4 : index
    %340 = memref.load %arg1[%c4] : memref<98xf32, #tpu.memory_space<smem>>
    %341 = vector.broadcast %340 : f32 to vector<1x256xf32>
    %342 = arith.mulf %339, %341 : vector<1x256xf32>
    %343 = arith.addf %337, %342 : vector<1x256xf32>
    %344 = vector.extract_strided_slice %338 {offsets = [1, 0], sizes = [1, 256], strides = [1, 1]} : vector<2x256xf32> to vector<1x256xf32>
    %c53 = arith.constant 53 : index
    %345 = memref.load %arg1[%c53] : memref<98xf32, #tpu.memory_space<smem>>
    %346 = vector.broadcast %345 : f32 to vector<1x256xf32>
    %347 = arith.mulf %344, %346 : vector<1x256xf32>
    %348 = arith.addf %343, %347 : vector<1x256xf32>
    %c0_61 = arith.constant 0 : index
    %c97 = arith.constant 97 : index
    %349 = vector.load %arg5[%c0_61, %c97] : memref<2x512xf32, #tpu.memory_space<vmem>>, vector<2x256xf32>
    %350 = vector.extract_strided_slice %349 {offsets = [0, 0], sizes = [1, 256], strides = [1, 1]} : vector<2x256xf32> to vector<1x256xf32>
    %c11 = arith.constant 11 : index
    %351 = memref.load %arg1[%c11] : memref<98xf32, #tpu.memory_space<smem>>
    %352 = vector.broadcast %351 : f32 to vector<1x256xf32>
    %353 = arith.mulf %350, %352 : vector<1x256xf32>
    %354 = arith.addf %348, %353 : vector<1x256xf32>
    %355 = vector.extract_strided_slice %349 {offsets = [1, 0], sizes = [1, 256], strides = [1, 1]} : vector<2x256xf32> to vector<1x256xf32>
    %c60 = arith.constant 60 : index
    %356 = memref.load %arg1[%c60] : memref<98xf32, #tpu.memory_space<smem>>
    %357 = vector.broadcast %356 : f32 to vector<1x256xf32>
    %358 = arith.mulf %355, %357 : vector<1x256xf32>
    %359 = arith.addf %354, %358 : vector<1x256xf32>
    %c0_62 = arith.constant 0 : index
    %c113 = arith.constant 113 : index
    %360 = vector.load %arg5[%c0_62, %c113] : memref<2x512xf32, #tpu.memory_space<vmem>>, vector<2x256xf32>
    %361 = vector.extract_strided_slice %360 {offsets = [0, 0], sizes = [1, 256], strides = [1, 1]} : vector<2x256xf32> to vector<1x256xf32>
    %c18 = arith.constant 18 : index
    %362 = memref.load %arg1[%c18] : memref<98xf32, #tpu.memory_space<smem>>
    %363 = vector.broadcast %362 : f32 to vector<1x256xf32>
    %364 = arith.mulf %361, %363 : vector<1x256xf32>
    %365 = arith.addf %359, %364 : vector<1x256xf32>
    %366 = vector.extract_strided_slice %360 {offsets = [1, 0], sizes = [1, 256], strides = [1, 1]} : vector<2x256xf32> to vector<1x256xf32>
    %c67 = arith.constant 67 : index
    %367 = memref.load %arg1[%c67] : memref<98xf32, #tpu.memory_space<smem>>
    %368 = vector.broadcast %367 : f32 to vector<1x256xf32>
    %369 = arith.mulf %366, %368 : vector<1x256xf32>
    %370 = arith.addf %365, %369 : vector<1x256xf32>
    %c0_63 = arith.constant 0 : index
    %c129 = arith.constant 129 : index
    %371 = vector.load %arg5[%c0_63, %c129] : memref<2x512xf32, #tpu.memory_space<vmem>>, vector<2x256xf32>
    %372 = vector.extract_strided_slice %371 {offsets = [0, 0], sizes = [1, 256], strides = [1, 1]} : vector<2x256xf32> to vector<1x256xf32>
    %c25 = arith.constant 25 : index
    %373 = memref.load %arg1[%c25] : memref<98xf32, #tpu.memory_space<smem>>
    %374 = vector.broadcast %373 : f32 to vector<1x256xf32>
    %375 = arith.mulf %372, %374 : vector<1x256xf32>
    %376 = arith.addf %370, %375 : vector<1x256xf32>
    %377 = vector.extract_strided_slice %371 {offsets = [1, 0], sizes = [1, 256], strides = [1, 1]} : vector<2x256xf32> to vector<1x256xf32>
    %c74 = arith.constant 74 : index
    %378 = memref.load %arg1[%c74] : memref<98xf32, #tpu.memory_space<smem>>
    %379 = vector.broadcast %378 : f32 to vector<1x256xf32>
    %380 = arith.mulf %377, %379 : vector<1x256xf32>
    %381 = arith.addf %376, %380 : vector<1x256xf32>
    %c0_64 = arith.constant 0 : index
    %c145 = arith.constant 145 : index
    %382 = vector.load %arg5[%c0_64, %c145] : memref<2x512xf32, #tpu.memory_space<vmem>>, vector<2x256xf32>
    %383 = vector.extract_strided_slice %382 {offsets = [0, 0], sizes = [1, 256], strides = [1, 1]} : vector<2x256xf32> to vector<1x256xf32>
    %c32 = arith.constant 32 : index
    %384 = memref.load %arg1[%c32] : memref<98xf32, #tpu.memory_space<smem>>
    %385 = vector.broadcast %384 : f32 to vector<1x256xf32>
    %386 = arith.mulf %383, %385 : vector<1x256xf32>
    %387 = arith.addf %381, %386 : vector<1x256xf32>
    %388 = vector.extract_strided_slice %382 {offsets = [1, 0], sizes = [1, 256], strides = [1, 1]} : vector<2x256xf32> to vector<1x256xf32>
    %c81_65 = arith.constant 81 : index
    %389 = memref.load %arg1[%c81_65] : memref<98xf32, #tpu.memory_space<smem>>
    %390 = vector.broadcast %389 : f32 to vector<1x256xf32>
    %391 = arith.mulf %388, %390 : vector<1x256xf32>
    %392 = arith.addf %387, %391 : vector<1x256xf32>
    %c0_66 = arith.constant 0 : index
    %c161 = arith.constant 161 : index
    %393 = vector.load %arg5[%c0_66, %c161] : memref<2x512xf32, #tpu.memory_space<vmem>>, vector<2x256xf32>
    %394 = vector.extract_strided_slice %393 {offsets = [0, 0], sizes = [1, 256], strides = [1, 1]} : vector<2x256xf32> to vector<1x256xf32>
    %c39 = arith.constant 39 : index
    %395 = memref.load %arg1[%c39] : memref<98xf32, #tpu.memory_space<smem>>
    %396 = vector.broadcast %395 : f32 to vector<1x256xf32>
    %397 = arith.mulf %394, %396 : vector<1x256xf32>
    %398 = arith.addf %392, %397 : vector<1x256xf32>
    %399 = vector.extract_strided_slice %393 {offsets = [1, 0], sizes = [1, 256], strides = [1, 1]} : vector<2x256xf32> to vector<1x256xf32>
    %c88 = arith.constant 88 : index
    %400 = memref.load %arg1[%c88] : memref<98xf32, #tpu.memory_space<smem>>
    %401 = vector.broadcast %400 : f32 to vector<1x256xf32>
    %402 = arith.mulf %399, %401 : vector<1x256xf32>
    %403 = arith.addf %398, %402 : vector<1x256xf32>
    %c0_67 = arith.constant 0 : index
    %c177 = arith.constant 177 : index
    %404 = vector.load %arg5[%c0_67, %c177] : memref<2x512xf32, #tpu.memory_space<vmem>>, vector<2x256xf32>
    %405 = vector.extract_strided_slice %404 {offsets = [0, 0], sizes = [1, 256], strides = [1, 1]} : vector<2x256xf32> to vector<1x256xf32>
    %c46 = arith.constant 46 : index
    %406 = memref.load %arg1[%c46] : memref<98xf32, #tpu.memory_space<smem>>
    %407 = vector.broadcast %406 : f32 to vector<1x256xf32>
    %408 = arith.mulf %405, %407 : vector<1x256xf32>
    %409 = arith.addf %403, %408 : vector<1x256xf32>
    %410 = vector.extract_strided_slice %404 {offsets = [1, 0], sizes = [1, 256], strides = [1, 1]} : vector<2x256xf32> to vector<1x256xf32>
    %c95_68 = arith.constant 95 : index
    %411 = memref.load %arg1[%c95_68] : memref<98xf32, #tpu.memory_space<smem>>
    %412 = vector.broadcast %411 : f32 to vector<1x256xf32>
    %413 = arith.mulf %410, %412 : vector<1x256xf32>
    %414 = arith.addf %409, %413 : vector<1x256xf32>
    %c4_69 = arith.constant 4 : index
    %c0_70 = arith.constant 0 : index
    %415 = vector.load %arg2[%c4_69, %c0_70] : memref<7x256xf32, #tpu.memory_space<vmem>>, vector<1x256xf32>
    %416 = arith.mulf %414, %415 : vector<1x256xf32>
    %417 = arith.addf %336, %416 : vector<1x256xf32>
    %cst_71 = arith.constant 0.000000e+00 : f32
    %418 = vector.broadcast %cst_71 : f32 to vector<1x256xf32>
    %c0_72 = arith.constant 0 : index
    %c82 = arith.constant 82 : index
    %419 = vector.load %arg5[%c0_72, %c82] : memref<2x512xf32, #tpu.memory_space<vmem>>, vector<2x256xf32>
    %420 = vector.extract_strided_slice %419 {offsets = [0, 0], sizes = [1, 256], strides = [1, 1]} : vector<2x256xf32> to vector<1x256xf32>
    %c5 = arith.constant 5 : index
    %421 = memref.load %arg1[%c5] : memref<98xf32, #tpu.memory_space<smem>>
    %422 = vector.broadcast %421 : f32 to vector<1x256xf32>
    %423 = arith.mulf %420, %422 : vector<1x256xf32>
    %424 = arith.addf %418, %423 : vector<1x256xf32>
    %425 = vector.extract_strided_slice %419 {offsets = [1, 0], sizes = [1, 256], strides = [1, 1]} : vector<2x256xf32> to vector<1x256xf32>
    %c54 = arith.constant 54 : index
    %426 = memref.load %arg1[%c54] : memref<98xf32, #tpu.memory_space<smem>>
    %427 = vector.broadcast %426 : f32 to vector<1x256xf32>
    %428 = arith.mulf %425, %427 : vector<1x256xf32>
    %429 = arith.addf %424, %428 : vector<1x256xf32>
    %c0_73 = arith.constant 0 : index
    %c98 = arith.constant 98 : index
    %430 = vector.load %arg5[%c0_73, %c98] : memref<2x512xf32, #tpu.memory_space<vmem>>, vector<2x256xf32>
    %431 = vector.extract_strided_slice %430 {offsets = [0, 0], sizes = [1, 256], strides = [1, 1]} : vector<2x256xf32> to vector<1x256xf32>
    %c12 = arith.constant 12 : index
    %432 = memref.load %arg1[%c12] : memref<98xf32, #tpu.memory_space<smem>>
    %433 = vector.broadcast %432 : f32 to vector<1x256xf32>
    %434 = arith.mulf %431, %433 : vector<1x256xf32>
    %435 = arith.addf %429, %434 : vector<1x256xf32>
    %436 = vector.extract_strided_slice %430 {offsets = [1, 0], sizes = [1, 256], strides = [1, 1]} : vector<2x256xf32> to vector<1x256xf32>
    %c61 = arith.constant 61 : index
    %437 = memref.load %arg1[%c61] : memref<98xf32, #tpu.memory_space<smem>>
    %438 = vector.broadcast %437 : f32 to vector<1x256xf32>
    %439 = arith.mulf %436, %438 : vector<1x256xf32>
    %440 = arith.addf %435, %439 : vector<1x256xf32>
    %c0_74 = arith.constant 0 : index
    %c114 = arith.constant 114 : index
    %441 = vector.load %arg5[%c0_74, %c114] : memref<2x512xf32, #tpu.memory_space<vmem>>, vector<2x256xf32>
    %442 = vector.extract_strided_slice %441 {offsets = [0, 0], sizes = [1, 256], strides = [1, 1]} : vector<2x256xf32> to vector<1x256xf32>
    %c19 = arith.constant 19 : index
    %443 = memref.load %arg1[%c19] : memref<98xf32, #tpu.memory_space<smem>>
    %444 = vector.broadcast %443 : f32 to vector<1x256xf32>
    %445 = arith.mulf %442, %444 : vector<1x256xf32>
    %446 = arith.addf %440, %445 : vector<1x256xf32>
    %447 = vector.extract_strided_slice %441 {offsets = [1, 0], sizes = [1, 256], strides = [1, 1]} : vector<2x256xf32> to vector<1x256xf32>
    %c68 = arith.constant 68 : index
    %448 = memref.load %arg1[%c68] : memref<98xf32, #tpu.memory_space<smem>>
    %449 = vector.broadcast %448 : f32 to vector<1x256xf32>
    %450 = arith.mulf %447, %449 : vector<1x256xf32>
    %451 = arith.addf %446, %450 : vector<1x256xf32>
    %c0_75 = arith.constant 0 : index
    %c130 = arith.constant 130 : index
    %452 = vector.load %arg5[%c0_75, %c130] : memref<2x512xf32, #tpu.memory_space<vmem>>, vector<2x256xf32>
    %453 = vector.extract_strided_slice %452 {offsets = [0, 0], sizes = [1, 256], strides = [1, 1]} : vector<2x256xf32> to vector<1x256xf32>
    %c26 = arith.constant 26 : index
    %454 = memref.load %arg1[%c26] : memref<98xf32, #tpu.memory_space<smem>>
    %455 = vector.broadcast %454 : f32 to vector<1x256xf32>
    %456 = arith.mulf %453, %455 : vector<1x256xf32>
    %457 = arith.addf %451, %456 : vector<1x256xf32>
    %458 = vector.extract_strided_slice %452 {offsets = [1, 0], sizes = [1, 256], strides = [1, 1]} : vector<2x256xf32> to vector<1x256xf32>
    %c75 = arith.constant 75 : index
    %459 = memref.load %arg1[%c75] : memref<98xf32, #tpu.memory_space<smem>>
    %460 = vector.broadcast %459 : f32 to vector<1x256xf32>
    %461 = arith.mulf %458, %460 : vector<1x256xf32>
    %462 = arith.addf %457, %461 : vector<1x256xf32>
    %c0_76 = arith.constant 0 : index
    %c146 = arith.constant 146 : index
    %463 = vector.load %arg5[%c0_76, %c146] : memref<2x512xf32, #tpu.memory_space<vmem>>, vector<2x256xf32>
    %464 = vector.extract_strided_slice %463 {offsets = [0, 0], sizes = [1, 256], strides = [1, 1]} : vector<2x256xf32> to vector<1x256xf32>
    %c33 = arith.constant 33 : index
    %465 = memref.load %arg1[%c33] : memref<98xf32, #tpu.memory_space<smem>>
    %466 = vector.broadcast %465 : f32 to vector<1x256xf32>
    %467 = arith.mulf %464, %466 : vector<1x256xf32>
    %468 = arith.addf %462, %467 : vector<1x256xf32>
    %469 = vector.extract_strided_slice %463 {offsets = [1, 0], sizes = [1, 256], strides = [1, 1]} : vector<2x256xf32> to vector<1x256xf32>
    %c82_77 = arith.constant 82 : index
    %470 = memref.load %arg1[%c82_77] : memref<98xf32, #tpu.memory_space<smem>>
    %471 = vector.broadcast %470 : f32 to vector<1x256xf32>
    %472 = arith.mulf %469, %471 : vector<1x256xf32>
    %473 = arith.addf %468, %472 : vector<1x256xf32>
    %c0_78 = arith.constant 0 : index
    %c162 = arith.constant 162 : index
    %474 = vector.load %arg5[%c0_78, %c162] : memref<2x512xf32, #tpu.memory_space<vmem>>, vector<2x256xf32>
    %475 = vector.extract_strided_slice %474 {offsets = [0, 0], sizes = [1, 256], strides = [1, 1]} : vector<2x256xf32> to vector<1x256xf32>
    %c40 = arith.constant 40 : index
    %476 = memref.load %arg1[%c40] : memref<98xf32, #tpu.memory_space<smem>>
    %477 = vector.broadcast %476 : f32 to vector<1x256xf32>
    %478 = arith.mulf %475, %477 : vector<1x256xf32>
    %479 = arith.addf %473, %478 : vector<1x256xf32>
    %480 = vector.extract_strided_slice %474 {offsets = [1, 0], sizes = [1, 256], strides = [1, 1]} : vector<2x256xf32> to vector<1x256xf32>
    %c89 = arith.constant 89 : index
    %481 = memref.load %arg1[%c89] : memref<98xf32, #tpu.memory_space<smem>>
    %482 = vector.broadcast %481 : f32 to vector<1x256xf32>
    %483 = arith.mulf %480, %482 : vector<1x256xf32>
    %484 = arith.addf %479, %483 : vector<1x256xf32>
    %c0_79 = arith.constant 0 : index
    %c178 = arith.constant 178 : index
    %485 = vector.load %arg5[%c0_79, %c178] : memref<2x512xf32, #tpu.memory_space<vmem>>, vector<2x256xf32>
    %486 = vector.extract_strided_slice %485 {offsets = [0, 0], sizes = [1, 256], strides = [1, 1]} : vector<2x256xf32> to vector<1x256xf32>
    %c47 = arith.constant 47 : index
    %487 = memref.load %arg1[%c47] : memref<98xf32, #tpu.memory_space<smem>>
    %488 = vector.broadcast %487 : f32 to vector<1x256xf32>
    %489 = arith.mulf %486, %488 : vector<1x256xf32>
    %490 = arith.addf %484, %489 : vector<1x256xf32>
    %491 = vector.extract_strided_slice %485 {offsets = [1, 0], sizes = [1, 256], strides = [1, 1]} : vector<2x256xf32> to vector<1x256xf32>
    %c96_80 = arith.constant 96 : index
    %492 = memref.load %arg1[%c96_80] : memref<98xf32, #tpu.memory_space<smem>>
    %493 = vector.broadcast %492 : f32 to vector<1x256xf32>
    %494 = arith.mulf %491, %493 : vector<1x256xf32>
    %495 = arith.addf %490, %494 : vector<1x256xf32>
    %c5_81 = arith.constant 5 : index
    %c0_82 = arith.constant 0 : index
    %496 = vector.load %arg2[%c5_81, %c0_82] : memref<7x256xf32, #tpu.memory_space<vmem>>, vector<1x256xf32>
    %497 = arith.mulf %495, %496 : vector<1x256xf32>
    %498 = arith.addf %417, %497 : vector<1x256xf32>
    %cst_83 = arith.constant 0.000000e+00 : f32
    %499 = vector.broadcast %cst_83 : f32 to vector<1x256xf32>
    %c0_84 = arith.constant 0 : index
    %c83 = arith.constant 83 : index
    %500 = vector.load %arg5[%c0_84, %c83] : memref<2x512xf32, #tpu.memory_space<vmem>>, vector<2x256xf32>
    %501 = vector.extract_strided_slice %500 {offsets = [0, 0], sizes = [1, 256], strides = [1, 1]} : vector<2x256xf32> to vector<1x256xf32>
    %c6 = arith.constant 6 : index
    %502 = memref.load %arg1[%c6] : memref<98xf32, #tpu.memory_space<smem>>
    %503 = vector.broadcast %502 : f32 to vector<1x256xf32>
    %504 = arith.mulf %501, %503 : vector<1x256xf32>
    %505 = arith.addf %499, %504 : vector<1x256xf32>
    %506 = vector.extract_strided_slice %500 {offsets = [1, 0], sizes = [1, 256], strides = [1, 1]} : vector<2x256xf32> to vector<1x256xf32>
    %c55 = arith.constant 55 : index
    %507 = memref.load %arg1[%c55] : memref<98xf32, #tpu.memory_space<smem>>
    %508 = vector.broadcast %507 : f32 to vector<1x256xf32>
    %509 = arith.mulf %506, %508 : vector<1x256xf32>
    %510 = arith.addf %505, %509 : vector<1x256xf32>
    %c0_85 = arith.constant 0 : index
    %c99 = arith.constant 99 : index
    %511 = vector.load %arg5[%c0_85, %c99] : memref<2x512xf32, #tpu.memory_space<vmem>>, vector<2x256xf32>
    %512 = vector.extract_strided_slice %511 {offsets = [0, 0], sizes = [1, 256], strides = [1, 1]} : vector<2x256xf32> to vector<1x256xf32>
    %c13 = arith.constant 13 : index
    %513 = memref.load %arg1[%c13] : memref<98xf32, #tpu.memory_space<smem>>
    %514 = vector.broadcast %513 : f32 to vector<1x256xf32>
    %515 = arith.mulf %512, %514 : vector<1x256xf32>
    %516 = arith.addf %510, %515 : vector<1x256xf32>
    %517 = vector.extract_strided_slice %511 {offsets = [1, 0], sizes = [1, 256], strides = [1, 1]} : vector<2x256xf32> to vector<1x256xf32>
    %c62 = arith.constant 62 : index
    %518 = memref.load %arg1[%c62] : memref<98xf32, #tpu.memory_space<smem>>
    %519 = vector.broadcast %518 : f32 to vector<1x256xf32>
    %520 = arith.mulf %517, %519 : vector<1x256xf32>
    %521 = arith.addf %516, %520 : vector<1x256xf32>
    %c0_86 = arith.constant 0 : index
    %c115 = arith.constant 115 : index
    %522 = vector.load %arg5[%c0_86, %c115] : memref<2x512xf32, #tpu.memory_space<vmem>>, vector<2x256xf32>
    %523 = vector.extract_strided_slice %522 {offsets = [0, 0], sizes = [1, 256], strides = [1, 1]} : vector<2x256xf32> to vector<1x256xf32>
    %c20 = arith.constant 20 : index
    %524 = memref.load %arg1[%c20] : memref<98xf32, #tpu.memory_space<smem>>
    %525 = vector.broadcast %524 : f32 to vector<1x256xf32>
    %526 = arith.mulf %523, %525 : vector<1x256xf32>
    %527 = arith.addf %521, %526 : vector<1x256xf32>
    %528 = vector.extract_strided_slice %522 {offsets = [1, 0], sizes = [1, 256], strides = [1, 1]} : vector<2x256xf32> to vector<1x256xf32>
    %c69 = arith.constant 69 : index
    %529 = memref.load %arg1[%c69] : memref<98xf32, #tpu.memory_space<smem>>
    %530 = vector.broadcast %529 : f32 to vector<1x256xf32>
    %531 = arith.mulf %528, %530 : vector<1x256xf32>
    %532 = arith.addf %527, %531 : vector<1x256xf32>
    %c0_87 = arith.constant 0 : index
    %c131 = arith.constant 131 : index
    %533 = vector.load %arg5[%c0_87, %c131] : memref<2x512xf32, #tpu.memory_space<vmem>>, vector<2x256xf32>
    %534 = vector.extract_strided_slice %533 {offsets = [0, 0], sizes = [1, 256], strides = [1, 1]} : vector<2x256xf32> to vector<1x256xf32>
    %c27 = arith.constant 27 : index
    %535 = memref.load %arg1[%c27] : memref<98xf32, #tpu.memory_space<smem>>
    %536 = vector.broadcast %535 : f32 to vector<1x256xf32>
    %537 = arith.mulf %534, %536 : vector<1x256xf32>
    %538 = arith.addf %532, %537 : vector<1x256xf32>
    %539 = vector.extract_strided_slice %533 {offsets = [1, 0], sizes = [1, 256], strides = [1, 1]} : vector<2x256xf32> to vector<1x256xf32>
    %c76 = arith.constant 76 : index
    %540 = memref.load %arg1[%c76] : memref<98xf32, #tpu.memory_space<smem>>
    %541 = vector.broadcast %540 : f32 to vector<1x256xf32>
    %542 = arith.mulf %539, %541 : vector<1x256xf32>
    %543 = arith.addf %538, %542 : vector<1x256xf32>
    %c0_88 = arith.constant 0 : index
    %c147 = arith.constant 147 : index
    %544 = vector.load %arg5[%c0_88, %c147] : memref<2x512xf32, #tpu.memory_space<vmem>>, vector<2x256xf32>
    %545 = vector.extract_strided_slice %544 {offsets = [0, 0], sizes = [1, 256], strides = [1, 1]} : vector<2x256xf32> to vector<1x256xf32>
    %c34 = arith.constant 34 : index
    %546 = memref.load %arg1[%c34] : memref<98xf32, #tpu.memory_space<smem>>
    %547 = vector.broadcast %546 : f32 to vector<1x256xf32>
    %548 = arith.mulf %545, %547 : vector<1x256xf32>
    %549 = arith.addf %543, %548 : vector<1x256xf32>
    %550 = vector.extract_strided_slice %544 {offsets = [1, 0], sizes = [1, 256], strides = [1, 1]} : vector<2x256xf32> to vector<1x256xf32>
    %c83_89 = arith.constant 83 : index
    %551 = memref.load %arg1[%c83_89] : memref<98xf32, #tpu.memory_space<smem>>
    %552 = vector.broadcast %551 : f32 to vector<1x256xf32>
    %553 = arith.mulf %550, %552 : vector<1x256xf32>
    %554 = arith.addf %549, %553 : vector<1x256xf32>
    %c0_90 = arith.constant 0 : index
    %c163 = arith.constant 163 : index
    %555 = vector.load %arg5[%c0_90, %c163] : memref<2x512xf32, #tpu.memory_space<vmem>>, vector<2x256xf32>
    %556 = vector.extract_strided_slice %555 {offsets = [0, 0], sizes = [1, 256], strides = [1, 1]} : vector<2x256xf32> to vector<1x256xf32>
    %c41 = arith.constant 41 : index
    %557 = memref.load %arg1[%c41] : memref<98xf32, #tpu.memory_space<smem>>
    %558 = vector.broadcast %557 : f32 to vector<1x256xf32>
    %559 = arith.mulf %556, %558 : vector<1x256xf32>
    %560 = arith.addf %554, %559 : vector<1x256xf32>
    %561 = vector.extract_strided_slice %555 {offsets = [1, 0], sizes = [1, 256], strides = [1, 1]} : vector<2x256xf32> to vector<1x256xf32>
    %c90 = arith.constant 90 : index
    %562 = memref.load %arg1[%c90] : memref<98xf32, #tpu.memory_space<smem>>
    %563 = vector.broadcast %562 : f32 to vector<1x256xf32>
    %564 = arith.mulf %561, %563 : vector<1x256xf32>
    %565 = arith.addf %560, %564 : vector<1x256xf32>
    %c0_91 = arith.constant 0 : index
    %c179 = arith.constant 179 : index
    %566 = vector.load %arg5[%c0_91, %c179] : memref<2x512xf32, #tpu.memory_space<vmem>>, vector<2x256xf32>
    %567 = vector.extract_strided_slice %566 {offsets = [0, 0], sizes = [1, 256], strides = [1, 1]} : vector<2x256xf32> to vector<1x256xf32>
    %c48 = arith.constant 48 : index
    %568 = memref.load %arg1[%c48] : memref<98xf32, #tpu.memory_space<smem>>
    %569 = vector.broadcast %568 : f32 to vector<1x256xf32>
    %570 = arith.mulf %567, %569 : vector<1x256xf32>
    %571 = arith.addf %565, %570 : vector<1x256xf32>
    %572 = vector.extract_strided_slice %566 {offsets = [1, 0], sizes = [1, 256], strides = [1, 1]} : vector<2x256xf32> to vector<1x256xf32>
    %c97_92 = arith.constant 97 : index
    %573 = memref.load %arg1[%c97_92] : memref<98xf32, #tpu.memory_space<smem>>
    %574 = vector.broadcast %573 : f32 to vector<1x256xf32>
    %575 = arith.mulf %572, %574 : vector<1x256xf32>
    %576 = arith.addf %571, %575 : vector<1x256xf32>
    %c6_93 = arith.constant 6 : index
    %c0_94 = arith.constant 0 : index
    %577 = vector.load %arg2[%c6_93, %c0_94] : memref<7x256xf32, #tpu.memory_space<vmem>>, vector<1x256xf32>
    %578 = arith.mulf %576, %577 : vector<1x256xf32>
    %579 = arith.addf %498, %578 : vector<1x256xf32>
    %580 = arith.negf %579 : vector<1x256xf32>
    %581 = math.exp %580 : vector<1x256xf32>
    %cst_95 = arith.constant 1.000000e+00 : f32
    %582 = vector.broadcast %cst_95 : f32 to vector<1x256xf32>
    %583 = arith.addf %582, %581 : vector<1x256xf32>
    %584 = arith.divf %582, %583 : vector<1x256xf32>
    %c0_96 = arith.constant 0 : index
    %c0_97 = arith.constant 0 : index
    %c0_98 = arith.constant 0 : index
    %585 = vector.load %arg3[%c0_96, %c0_97, %c0_98] : memref<1x4x256xf32, #tpu.memory_space<vmem>>, vector<1x4x256xf32>
    %586 = vector.shape_cast %585 : vector<1x4x256xf32> to vector<4x256xf32>
    %587 = vector.broadcast %584 : vector<1x256xf32> to vector<4x256xf32>
    %588 = arith.mulf %586, %587 : vector<4x256xf32>
    %c0_99 = arith.constant 0 : index
    %c0_100 = arith.constant 0 : index
    %c0_101 = arith.constant 0 : index
    %589 = vector.load %arg4[%c0_99, %c0_100, %c0_101] : memref<1x4x256xf32, #tpu.memory_space<vmem>>, vector<1x4x256xf32>
    %590 = vector.shape_cast %589 : vector<1x4x256xf32> to vector<4x256xf32>
    %591 = vector.shape_cast %588 : vector<4x256xf32> to vector<1x4x256xf32>
    tpu.vector_store %arg4[%c0_99, %c0_100, %c0_101], %591 {strides = array<i32>} : memref<1x4x256xf32, #tpu.memory_space<vmem>>, vector<1x4x256xf32>,
    return
  }
  func.func @transform_0(%arg0: i32) -> i32 {
    %c0_i32 = arith.constant 0 : i32
    %c0_i32_0 = arith.constant 0 : i32
    return %c0_i32 : i32
  }
  func.func @transform_1(%arg0: i32) -> (i32, i32) {
    %c0_i32 = arith.constant 0 : i32
    %c0_i32_0 = arith.constant 0 : i32
    %c0_i32_1 = arith.constant 0 : i32
    return %c0_i32, %c0_i32_0 : i32, i32
  }
  func.func @transform_2(%arg0: i32) -> (i32, i32, i32) {
    %c0_i32 = arith.constant 0 : i32
    %c0_i32_0 = arith.constant 0 : i32
    %c0_i32_1 = arith.constant 0 : i32
    return %arg0, %c0_i32, %c0_i32_0 : i32, i32, i32
  }
  func.func @transform_3(%arg0: i32) -> (i32, i32, i32) {
    %c0_i32 = arith.constant 0 : i32
    %c0_i32_0 = arith.constant 0 : i32
    %c0_i32_1 = arith.constant 0 : i32
    return %arg0, %c0_i32, %c0_i32_0 : i32, i32, i32
  }
}

</mosaic_0001>

<llo_original>
// kernel: tpu_custom_call.1
$region0: #{tpu_custom_call.1}
  #allocation0 [shape = 'u32[]', space=smem, size = 0x4, offset = 0x4, fixed_abs, tag = 'smem constant byte address 0x4 - core index']
  #allocation1 [shape = 'u32[72,128]{1,0:T(1,128)}', space=vmem, size = 0x9000, scoped, tag = 'internal scratch']
  #allocation2 [shape = 'f32[2,512]{1,0:T(2,128)}', space=vmem, size = 0x1000, scoped, tag = 'scratch operand']
  %s0 = inlined_call_operand.hbm [shape: f32[98], index: 0, kind: input, shape index: {}]
  %s1 = inlined_call_operand.hbm [shape: f32[7,256], index: 1, kind: input, shape index: {}]
  %s2 = inlined_call_operand.hbm [shape: f32[2,4,256], index: 2, kind: input, shape index: {}]
  %s3 = inlined_call_operand.hbm [shape: f32[2,4,256], index: 3, kind: output, shape index: {}]
  %s4 = sld [smem:[#allocation0]]
  $region57: #{tpu_custom_call.1} parent=0
    _
  %s6 = ssub.s32 1, %s4
  %s7 = scalar_select 0, %s6, %s4
  $region1: #{tpu_custom_call.1} parent=0
    #allocation3 [shape = 'u8[512]{0}', space=smem, size = 0x200, scoped, tag = 'input window, operand 0, single buffered']
    #allocation4 [shape = 's32[2]{0}', space=sflag, size = 0x8, scoped, tag = 'scoped memory for tpu_custom_call.1']
    #allocation5 [shape = 's32[2]{0}', space=sflag, size = 0x8, scoped, tag = 'scoped memory for tpu_custom_call.1']
    #allocation6 [shape = 's32[2]{0}', space=sflag, size = 0x8, scoped, tag = 'scoped memory for tpu_custom_call.1']
    #allocation7 [shape = 'u8[8192]{0}', space=vmem, size = 0x2000, scoped, tag = 'input window, operand 1, single buffered']
    #allocation8 [shape = 'u8[8192]{0}', space=vmem, size = 0x2000, scoped, tag = 'input window, operand 2']
    #allocation9 [shape = 's32[2]{0}', space=sflag, size = 0x8, scoped, tag = 'scoped memory for tpu_custom_call.1']
    #allocation10 [shape = 'u8[8192]{0}', space=vmem, size = 0x2000, scoped, tag = 'output window, operand 0']
    %8 = vsyncpa [#allocation6], 0
    %9 = vsyncpa [#allocation4], 0
    %10 = vsyncpa [#allocation9], 0
    %s11 = scalar_lea.sflag [#allocation9], 1
    %12 = vsyncpa %s11, 0
    %13 = vsyncpa [#allocation5], 0
    %s14 = scalar_lea.sflag [#allocation5], 1
    %15 = vsyncpa %s14, 0
    loop: start=0, step=1, limit=4
    $region2: #{tpu_custom_call.1} parent=1 // loop_pre_header
      _
    $region3: #{tpu_custom_call.1} parent=1 // loop_header
      %s17 = sphi 0, %s21
      %p18 = scmp.ge.s32.totalorder %s17, 4
      %s25 = sphi 0, %s25
      %s27 = sphi 0, %s25
      %s28 = sphi 0, %s27
      %s42 = sphi 0, %s28
      %s46 = sphi 0, %s46
      %s48 = sphi 0, %s46
      %s49 = sphi 0, %s48
      %s63 = sphi 0, %s49
      %s69 = sphi 0, %s71
      %s72 = sphi 0, %s69
      %s73 = sphi 0, %s72
      %s89 = sphi 0, %s73
      %s95 = sphi 0, %s97
      %s98 = sphi 0, %s95
      %s99 = sphi 0, %s98
      %s115 = sphi 0, %s99
    $region4: #{tpu_custom_call.1} parent=1 // loop_header_branch
      %20 = sbr.rel (%p18) target = $region8
    $region5: #{tpu_custom_call.1} parent=1 // loop_body
      %s22 = ssub.s32 %s17, 1
      %s23 = ssub.s32 %s17, 2
      %s24 = sadd.s32 %s17, 1
      %s26 = sadd.s32 %s25, 1
      %p29 = scmp.eq.s32.totalorder %s17, 1
      %p30 = scmp.ne.s32.totalorder %s25, %s27
      %p31 = scmp.eq.s32.totalorder %s17, 0
      %p32 = por %p30, %p31
      %p33 = scmp.ne.s32.totalorder %s25, %s27
      %p34 = scmp.eq.s32.totalorder %s22, 1
      %p35 = por %p33, %p34
      %p36 = scmp.ne.s32.totalorder %s27, %s28
      %p37 = scmp.eq.s32.totalorder %s22, 0
      %p38 = por %p36, %p37
      %p39 = scmp.ne.s32.totalorder %s27, %s28
      %p40 = scmp.eq.s32.totalorder %s23, 1
      %p41 = por %p39, %p40
      %p43 = scmp.ne.s32.totalorder %s28, %s42
      %p44 = scmp.eq.s32.totalorder %s23, 0
      %p45 = por %p43, %p44
      %s47 = sadd.s32 %s46, 1
      %p50 = scmp.eq.s32.totalorder %s17, 1
      %p51 = scmp.ne.s32.totalorder %s46, %s48
      %p52 = scmp.eq.s32.totalorder %s17, 0
      %p53 = por %p51, %p52
      %p54 = scmp.ne.s32.totalorder %s46, %s48
      %p55 = scmp.eq.s32.totalorder %s22, 1
      %p56 = por %p54, %p55
      %p57 = scmp.ne.s32.totalorder %s48, %s49
      %p58 = scmp.eq.s32.totalorder %s22, 0
      %p59 = por %p57, %p58
      %p60 = scmp.ne.s32.totalorder %s48, %s49
      %p61 = scmp.eq.s32.totalorder %s23, 1
      %p62 = por %p60, %p61
      %p64 = scmp.ne.s32.totalorder %s49, %s63
      %p65 = scmp.eq.s32.totalorder %s23, 0
      %p66 = por %p64, %p65
      %s67 = ssub.s32 %s17, %s24
      %p68 = scmp.eq.s32.totalorder %s67, 0
      %s70 = sadd.s32 %s69, 1
      %s71 = scalar_select %p68, %s69, %s70
      %p74 = pneg %p68
      %p75 = scmp.eq.s32.totalorder %s17, 1
      %p76 = por %p74, %p75
      %p77 = scmp.ne.s32.totalorder %s69, %s72
      %p78 = scmp.eq.s32.totalorder %s17, 0
      %p79 = por %p77, %p78
      %p80 = scmp.ne.s32.totalorder %s69, %s72
      %p81 = scmp.eq.s32.totalorder %s22, 1
      %p82 = por %p80, %p81
      %p83 = scmp.ne.s32.totalorder %s72, %s73
      %p84 = scmp.eq.s32.totalorder %s22, 0
      %p85 = por %p83, %p84
      %p86 = scmp.ne.s32.totalorder %s72, %s73
      %p87 = scmp.eq.s32.totalorder %s23, 1
      %p88 = por %p86, %p87
      %p90 = scmp.ne.s32.totalorder %s73, %s89
      %p91 = scmp.eq.s32.totalorder %s23, 0
      %p92 = por %p90, %p91
      %s93 = ssub.s32 %s17, %s24
      %p94 = scmp.eq.s32.totalorder %s93, 0
      %s96 = sadd.s32 %s95, 1
      %s97 = scalar_select %p94, %s95, %s96
      %p100 = pneg %p94
      %p101 = scmp.eq.s32.totalorder %s17, 1
      %p102 = por %p100, %p101
      %p103 = scmp.ne.s32.totalorder %s95, %s98
      %p104 = scmp.eq.s32.totalorder %s17, 0
      %p105 = por %p103, %p104
      %p106 = scmp.ne.s32.totalorder %s95, %s98
      %p107 = scmp.eq.s32.totalorder %s22, 1
      %p108 = por %p106, %p107
      %p109 = scmp.ne.s32.totalorder %s98, %s99
      %p110 = scmp.eq.s32.totalorder %s22, 0
      %p111 = por %p109, %p110
      %p112 = scmp.ne.s32.totalorder %s98, %s99
      %p113 = scmp.eq.s32.totalorder %s23, 1
      %p114 = por %p112, %p113
      %p116 = scmp.ne.s32.totalorder %s99, %s115
      %p117 = scmp.eq.s32.totalorder %s23, 0
      %p118 = por %p116, %p117
      %p119 = scmp.le.s32.totalorder 1, %s17
      %p120 = scmp.lt.s32.totalorder %s17, 3
      %p121 = pnand %p119, %p120
      %p122 = pneg %p121
      // Predicated region
      $region9: #{tpu_custom_call.1} parent=5 // pred_check
        _
      $region10: #{tpu_custom_call.1} parent=5 // pred_check_branch
        %124 = sbr.rel (%p121) target = $region12
      $region11: #{tpu_custom_call.1} parent=5 // pred_region
        %s125 = ssub.s32 %s17, 1
        // Predicated region
        $region13: #{tpu_custom_call.1} parent=11 // pred_check
          %p126 = pneg %p38
        $region14: #{tpu_custom_call.1} parent=11 // pred_check_branch
          %128 = sbr.rel (%p126) target = $region16
        $region15: #{tpu_custom_call.1} parent=11 // pred_region
          %130 = vsyncadd [#allocation6], 0
          %s132 = sshll.u32 %s0, 4
          %s133 = int_to_ptr.hbm [resolvable:$true] %s132
          %135 = dma.hbm_to_smem %s133, 16, [#allocation3], [#allocation6]
        $region16: #{tpu_custom_call.1} parent=11 // pred_fallthru
          _
        // Predicated region
        $region17: #{tpu_custom_call.1} parent=11 // pred_check
          %p136 = pneg %p59
        $region18: #{tpu_custom_call.1} parent=11 // pred_check_branch
          %138 = sbr.rel (%p136) target = $region20
        $region19: #{tpu_custom_call.1} parent=11 // pred_region
          %140 = vsyncadd [#allocation4], 0
          %s142 = sshll.u32 %s1, 4
          %s143 = int_to_ptr.hbm [resolvable:$true] %s142
          %s144 = sshll.u32 [#allocation7], 4
          %s145 = int_to_ptr.vmem [resolvable:$true] %s144
          %147 = dma.hbm_to_vmem [thread:$0]  %s143, 256, %s145, [#allocation4]
        $region20: #{tpu_custom_call.1} parent=11 // pred_fallthru
          _
      $region12: #{tpu_custom_call.1} parent=5 // pred_fallthru
        _
      %p148 = scmp.lt.s32.totalorder %s17, 2
      // Predicated region
      $region21: #{tpu_custom_call.1} parent=5 // pred_check
        %p149 = pneg %p148
      $region22: #{tpu_custom_call.1} parent=5 // pred_check_branch
        %151 = sbr.rel (%p149) target = $region24
      $region23: #{tpu_custom_call.1} parent=5 // pred_region
        // Predicated region
        $region25: #{tpu_custom_call.1} parent=23 // pred_check
          %p152 = pneg %p79
        $region26: #{tpu_custom_call.1} parent=23 // pred_check_branch
          %154 = sbr.rel (%p152) target = $region28
        $region27: #{tpu_custom_call.1} parent=23 // pred_region
          %s155 = sand.u32 %s69, 1
          %s156 = scalar_lea.sflag [#allocation9], %s155
          %s157 = sand.u32 %s69, 1
          %s158 = smul.addr %s157, 8
          %s159 = scalar_lea.vmem [#allocation8], %s158
          %161 = vsyncadd %s156, 0
          %s162 = smul.addr %s17, 2
          %s163 = smul.addr %s162, 4
          %s164 = scalar_lea.hbm %s2, %s163
          %s166 = sshll.u32 %s164, 4
          %s167 = int_to_ptr.hbm [resolvable:$true] %s166
          %s168 = sshll.u32 %s159, 4
          %s169 = int_to_ptr.vmem [resolvable:$true] %s168
          %171 = dma.hbm_to_vmem [thread:$0]  %s167, 128, %s169, %s156
        $region28: #{tpu_custom_call.1} parent=23 // pred_fallthru
          _
      $region24: #{tpu_custom_call.1} parent=5 // pred_fallthru
        _
      %p172 = scmp.le.s32.totalorder 1, %s17
      %p173 = scmp.lt.s32.totalorder %s17, 3
      %p174 = pnand %p172, %p173
      %p175 = pneg %p174
      // Predicated region
      $region29: #{tpu_custom_call.1} parent=5 // pred_check
        _
      $region30: #{tpu_custom_call.1} parent=5 // pred_check_branch
        %177 = sbr.rel (%p174) target = $region32
      $region31: #{tpu_custom_call.1} parent=5 // pred_region
        %s178 = ssub.s32 %s17, 1
        // Predicated region
        $region33: #{tpu_custom_call.1} parent=31 // pred_check
          %p179 = pneg %p38
        $region34: #{tpu_custom_call.1} parent=31 // pred_check_branch
          %181 = sbr.rel (%p179) target = $region36
        $region35: #{tpu_custom_call.1} parent=31 // pred_region
          %183 = dma.done [#allocation6], 16
        $region36: #{tpu_custom_call.1} parent=31 // pred_fallthru
          _
        // Predicated region
        $region37: #{tpu_custom_call.1} parent=31 // pred_check
          %p184 = pneg %p59
        $region38: #{tpu_custom_call.1} parent=31 // pred_check_branch
          %186 = sbr.rel (%p184) target = $region40
        $region39: #{tpu_custom_call.1} parent=31 // pred_region
          %188 = dma.done [#allocation4], 256
        $region40: #{tpu_custom_call.1} parent=31 // pred_fallthru
          _
        %s189 = sand.u32 %s72, 1
        %s190 = scalar_lea.sflag [#allocation9], %s189
        %s191 = sand.u32 %s72, 1
        %s192 = smul.addr %s191, 8
        %s193 = scalar_lea.vmem [#allocation8], %s192
        // Predicated region
        $region41: #{tpu_custom_call.1} parent=31 // pred_check
          %p194 = pneg %p85
        $region42: #{tpu_custom_call.1} parent=31 // pred_check_branch
          %196 = sbr.rel (%p194) target = $region44
        $region43: #{tpu_custom_call.1} parent=31 // pred_region
          %198 = dma.done %s190, 128
        $region44: #{tpu_custom_call.1} parent=31 // pred_fallthru
          _
        %199 = sfence
        %p200 = pneg %p38
        %p201 = pneg %p35
        %p202 = pneg %p59
        %p203 = pneg %p56
        %s204 = sand.u32 %s72, 1
        %s205 = scalar_lea.sflag [#allocation9], %s204
        %s206 = sand.u32 %s72, 1
        %s207 = smul.addr %s206, 8
        %s208 = scalar_lea.vmem [#allocation8], %s207
        %p209 = pneg %p85
        %p210 = pneg %p82
        %p211 = pneg %p111
        %p212 = pneg %p108
        %s213 = sand.u32 %s98, 1
        %s214 = scalar_lea.sflag [#allocation5], %s213
        %s215 = sand.u32 %s98, 1
        %s216 = smul.addr %s215, 8
        %s217 = scalar_lea.vmem [#allocation10], %s216
        %218 = vst [vmem:[#allocation2] sm:$0xff] 0.0
        %v219 = vld [vmem:[%s193] sm:$0xff]
        %221 = vst [vmem:[#allocation1] ss:$2 sm:$0xff] %v219
        %v222 = vld.sshfl [vmem:[#allocation1] sm:$0xff pattern:$0x75316420]
        %v223 = vld.sshfl [vmem:[#allocation1 + $0x8] sm:$0xff pattern:$0x75316420]
        %vm226 = vcmask 1043456
        %v227 = vsel %vm226, %v222, 0.0
        %v228 = vrot.slane %v227, 4
        %v229 = vadd.f32 %v227, %v228
        %v230 = vrot.slane %v229, 2
        %v231 = vadd.f32 %v229, %v230
        %v232 = vrot.slane %v231, 1
        %v233 = vadd.f32 %v231, %v232
        %v234 = vsel %vm226, %v223, 0.0
        %v235 = vrot.slane %v234, 4
        %v236 = vadd.f32 %v234, %v235
        %v237 = vrot.slane %v236, 2
        %v238 = vadd.f32 %v236, %v237
        %v239 = vrot.slane %v238, 1
        %v240 = vadd.f32 %v238, %v239
        %v241 = vrcp.pop 4.0
        %v242 = vmul.f32 4.0, %v241
        %v243 = vsub.f32 1.0, %v242
        %v244 = vmul.f32 %v241, %v243
        %v245 = vadd.f32 %v241, %v244
        %vm246 = vweird.f32 %v241
        %v247 = vsel %vm246, %v241, %v245
        %v248 = vmul.f32 %v233, %v247
        %v249 = vmul.f32 %v240, %v247
        %v252 = vrot.slane %v249, 7
        %vm253 = vcmask 1040384
        %v254 = vsel %vm253, %v248, %v252
        %v256 = vlaneseq
        %vm257 = vcmp.ge.s32.totalorder %v256, 0
        %vm258 = vcmp.lt.s32.totalorder %v256, 256
        %vm259 = vmand %vm257, %vm258
        %s260 = scalar_lea.vmem [#allocation2], 2
        %261 = vst.msk [vmem:[%s260] ss:$2 sm:$0x3] %vm259, %v254
        %262 = vst [vmem:[#allocation1] ss:$2 sm:$0xff] %v219
        %v263 = vld.sshfl [vmem:[#allocation1] sm:$0xff pattern:$0x75316420]
        %v264 = vld.sshfl [vmem:[#allocation1 + $0x8] sm:$0xff pattern:$0x75316420]
        %v267 = vsel %vm226, %v263, -inf
        %v268 = vrot.slane %v267, 4
        %v269 = vmax.f32 %v267, %v268
        %v270 = vrot.slane %v269, 2
        %v271 = vmax.f32 %v269, %v270
        %v272 = vrot.slane %v271, 1
        %v273 = vmax.f32 %v271, %v272
        %v274 = vsel %vm226, %v264, -inf
        %v275 = vrot.slane %v274, 4
        %v276 = vmax.f32 %v274, %v275
        %v277 = vrot.slane %v276, 2
        %v278 = vmax.f32 %v276, %v277
        %v279 = vrot.slane %v278, 1
        %v280 = vmax.f32 %v278, %v279
        %v283 = vrot.slane %v280, 7
        %v284 = vsel %vm253, %v273, %v283
        %s286 = scalar_lea.vmem [#allocation2], 3
        %287 = vst.msk [vmem:[%s286] ss:$2 sm:$0x3] %vm259, %v284
        %v288 = vld [vmem:[#allocation2] sm:$0x3f]
        %s289 = sld [smem:[#allocation3]]
        %v290 = vstv %s289
        %v291 = vmul.f32 %v288, %v290
        %v292 = vadd.f32 %v291, 0.0
        %s293 = sld [smem:[#allocation3 + $0x31]]
        %v294 = vstv %s293
        %v295 = vmul.f32 %v288, %v294
        %v297 = vrot.slane %v295, 7
        %v298 = vrot.slane %v297, 2
        %v300 = vadd.f32 %v292, %v298
        %s301 = sld [smem:[#allocation3 + $0x7]]
        %v302 = vstv %s301
        %v303 = vmul.f32 %v288, %v302
        %305 = vrot.lane.b32.xlu0 %v303, 112
        %v306 = vpop.permute.xlu0 %305
        %v307 = vrot.slane %v306, 2
        %vm308 = vcmask 916480
        %v309 = vsel %vm308, %v306, %v307
        %v311 = vadd.f32 %v300, %v309
        %s312 = sld [smem:[#allocation3 + $0x38]]
        %v313 = vstv %s312
        %v314 = vmul.f32 %v288, %v313
        %v316 = vrot.slane %v314, 7
        %v317 = vrot.slane %v316, 2
        %318 = vrot.lane.b32.xlu0 %v317, 112
        %v319 = vpop.permute.xlu0 %318
        %v320 = vrot.slane %v319, 2
        %v321 = vsel %vm308, %v319, %v320
        %v323 = vadd.f32 %v311, %v321
        %s324 = sld [smem:[#allocation3 + $0xe]]
        %v325 = vstv %s324
        %v326 = vmul.f32 %v288, %v325
        %328 = vrot.lane.b32.xlu0 %v326, 96
        %v329 = vpop.permute.xlu0 %328
        %v330 = vrot.slane %v329, 2
        %vm331 = vcmask 785408
        %v332 = vsel %vm331, %v329, %v330
        %v334 = vadd.f32 %v323, %v332
        %s335 = sld [smem:[#allocation3 + $0x3f]]
        %v336 = vstv %s335
        %v337 = vmul.f32 %v288, %v336
        %v339 = vrot.slane %v337, 7
        %v340 = vrot.slane %v339, 2
        %341 = vrot.lane.b32.xlu0 %v340, 96
        %v342 = vpop.permute.xlu0 %341
        %v343 = vrot.slane %v342, 2
        %v344 = vsel %vm331, %v342, %v343
        %v346 = vadd.f32 %v334, %v344
        %s347 = sld [smem:[#allocation3 + $0x15]]
        %v348 = vstv %s347
        %v349 = vmul.f32 %v288, %v348
        %351 = vrot.lane.b32.xlu0 %v349, 80
        %v352 = vpop.permute.xlu0 %351
        %v353 = vrot.slane %v352, 2
        %vm354 = vcmask 654336
        %v355 = vsel %vm354, %v352, %v353
        %v357 = vadd.f32 %v346, %v355
        %s358 = sld [smem:[#allocation3 + $0x46]]
        %v359 = vstv %s358
        %v360 = vmul.f32 %v288, %v359
        %v362 = vrot.slane %v360, 7
        %v363 = vrot.slane %v362, 2
        %364 = vrot.lane.b32.xlu0 %v363, 80
        %v365 = vpop.permute.xlu0 %364
        %v366 = vrot.slane %v365, 2
        %v367 = vsel %vm354, %v365, %v366
        %v369 = vadd.f32 %v357, %v367
        %v370 = vld [vmem:[#allocation2 + $0x2] sm:$0x3f]
        %s371 = sld [smem:[#allocation3 + $0x1c]]
        %v372 = vstv %s371
        %v373 = vmul.f32 %v370, %v372
        %375 = vrot.lane.b32.xlu0 %v373, 64
        %v376 = vpop.permute.xlu0 %375
        %v377 = vrot.slane %v376, 6
        %vm378 = vcmask 523264
        %v379 = vsel %vm378, %v377, %v376
        %v381 = vadd.f32 %v369, %v379
        %s382 = sld [smem:[#allocation3 + $0x4d]]
        %v383 = vstv %s382
        %v384 = vmul.f32 %v370, %v383
        %v386 = vrot.slane %v384, 7
        %v387 = vrot.slane %v386, 2
        %388 = vrot.lane.b32.xlu0 %v387, 64
        %v389 = vpop.permute.xlu0 %388
        %v390 = vrot.slane %v389, 6
        %v391 = vsel %vm378, %v390, %v389
        %v393 = vadd.f32 %v381, %v391
        %s394 = sld [smem:[#allocation3 + $0x23]]
        %v395 = vstv %s394
        %v396 = vmul.f32 %v370, %v395
        %398 = vrot.lane.b32.xlu0 %v396, 48
        %v399 = vpop.permute.xlu0 %398
        %v400 = vrot.slane %v399, 6
        %vm401 = vcmask 392192
        %v402 = vsel %vm401, %v400, %v399
        %v404 = vadd.f32 %v393, %v402
        %s405 = sld [smem:[#allocation3 + $0x54]]
        %v406 = vstv %s405
        %v407 = vmul.f32 %v370, %v406
        %v409 = vrot.slane %v407, 7
        %v410 = vrot.slane %v409, 2
        %411 = vrot.lane.b32.xlu0 %v410, 48
        %v412 = vpop.permute.xlu0 %411
        %v413 = vrot.slane %v412, 6
        %v414 = vsel %vm401, %v413, %v412
        %v416 = vadd.f32 %v404, %v414
        %s417 = sld [smem:[#allocation3 + $0x2a]]
        %v418 = vstv %s417
        %v419 = vmul.f32 %v370, %v418
        %421 = vrot.lane.b32.xlu0 %v419, 32
        %v422 = vpop.permute.xlu0 %421
        %v423 = vrot.slane %v422, 6
        %vm424 = vcmask 261120
        %v425 = vsel %vm424, %v423, %v422
        %v427 = vadd.f32 %v416, %v425
        %s428 = sld [smem:[#allocation3 + $0x5b]]
        %v429 = vstv %s428
        %v430 = vmul.f32 %v370, %v429
        %v432 = vrot.slane %v430, 7
        %v433 = vrot.slane %v432, 2
        %434 = vrot.lane.b32.xlu0 %v433, 32
        %v435 = vpop.permute.xlu0 %434
        %v436 = vrot.slane %v435, 6
        %v437 = vsel %vm424, %v436, %v435
        %v439 = vadd.f32 %v427, %v437
        %v440 = vld [vmem:[#allocation7] ss:$8 sm:$0x3]
        %v443 = vunpack.c.l.s4 857870592
        %v444 = vunpack.c.0.s8 %v443
        %v445 = vperm.slane %v440, %v444
        %446 = vrot.lane.b32.xlu0 %v445, 77
        %v447 = vpop.permute.xlu0 %446
        %v448 = vrot.slane %v447, 6
        %vm449 = vcmask 629760
        %v450 = vsel %vm449, %v448, %v447
        %v452 = vmul.f32 %v439, %v450
        %v453 = vadd.f32 %v452, 0.0
        %s454 = sld [smem:[#allocation3 + $0x1]]
        %v455 = vstv %s454
        %v456 = vmul.f32 %v288, %v455
        %v457 = vadd.f32 %v456, 0.0
        %s458 = sld [smem:[#allocation3 + $0x32]]
        %v459 = vstv %s458
        %v460 = vmul.f32 %v288, %v459
        %v462 = vrot.slane %v460, 7
        %v463 = vrot.slane %v462, 2
        %v465 = vadd.f32 %v457, %v463
        %s466 = sld [smem:[#allocation3 + $0x8]]
        %v467 = vstv %s466
        %v468 = vmul.f32 %v288, %v467
        %470 = vrot.lane.b32.xlu0 %v468, 112
        %v471 = vpop.permute.xlu0 %470
        %v472 = vrot.slane %v471, 2
        %v473 = vsel %vm308, %v471, %v472
        %v475 = vadd.f32 %v465, %v473
        %s476 = sld [smem:[#allocation3 + $0x39]]
        %v477 = vstv %s476
        %v478 = vmul.f32 %v288, %v477
        %v480 = vrot.slane %v478, 7
        %v481 = vrot.slane %v480, 2
        %482 = vrot.lane.b32.xlu0 %v481, 112
        %v483 = vpop.permute.xlu0 %482
        %v484 = vrot.slane %v483, 2
        %v485 = vsel %vm308, %v483, %v484
        %v487 = vadd.f32 %v475, %v485
        %s488 = sld [smem:[#allocation3 + $0xf]]
        %v489 = vstv %s488
        %v490 = vmul.f32 %v288, %v489
        %492 = vrot.lane.b32.xlu0 %v490, 96
        %v493 = vpop.permute.xlu0 %492
        %v494 = vrot.slane %v493, 2
        %v495 = vsel %vm331, %v493, %v494
        %v497 = vadd.f32 %v487, %v495
        %s498 = sld [smem:[#allocation3 + $0x40]]
        %v499 = vstv %s498
        %v500 = vmul.f32 %v288, %v499
        %v502 = vrot.slane %v500, 7
        %v503 = vrot.slane %v502, 2
        %504 = vrot.lane.b32.xlu0 %v503, 96
        %v505 = vpop.permute.xlu0 %504
        %v506 = vrot.slane %v505, 2
        %v507 = vsel %vm331, %v505, %v506
        %v509 = vadd.f32 %v497, %v507
        %s510 = sld [smem:[#allocation3 + $0x16]]
        %v511 = vstv %s510
        %v512 = vmul.f32 %v288, %v511
        %514 = vrot.lane.b32.xlu0 %v512, 80
        %v515 = vpop.permute.xlu0 %514
        %v516 = vrot.slane %v515, 2
        %v517 = vsel %vm354, %v515, %v516
        %v519 = vadd.f32 %v509, %v517
        %s520 = sld [smem:[#allocation3 + $0x47]]
        %v521 = vstv %s520
        %v522 = vmul.f32 %v288, %v521
        %v524 = vrot.slane %v522, 7
        %v525 = vrot.slane %v524, 2
        %526 = vrot.lane.b32.xlu0 %v525, 80
        %v527 = vpop.permute.xlu0 %526
        %v528 = vrot.slane %v527, 2
        %v529 = vsel %vm354, %v527, %v528
        %v531 = vadd.f32 %v519, %v529
        %s532 = sld [smem:[#allocation3 + $0x1d]]
        %v533 = vstv %s532
        %v534 = vmul.f32 %v370, %v533
        %536 = vrot.lane.b32.xlu0 %v534, 64
        %v537 = vpop.permute.xlu0 %536
        %v538 = vrot.slane %v537, 6
        %v539 = vsel %vm378, %v538, %v537
        %v541 = vadd.f32 %v531, %v539
        %s542 = sld [smem:[#allocation3 + $0x4e]]
        %v543 = vstv %s542
        %v544 = vmul.f32 %v370, %v543
        %v546 = vrot.slane %v544, 7
        %v547 = vrot.slane %v546, 2
        %548 = vrot.lane.b32.xlu0 %v547, 64
        %v549 = vpop.permute.xlu0 %548
        %v550 = vrot.slane %v549, 6
        %v551 = vsel %vm378, %v550, %v549
        %v553 = vadd.f32 %v541, %v551
        %s554 = sld [smem:[#allocation3 + $0x24]]
        %v555 = vstv %s554
        %v556 = vmul.f32 %v370, %v555
        %558 = vrot.lane.b32.xlu0 %v556, 48
        %v559 = vpop.permute.xlu0 %558
        %v560 = vrot.slane %v559, 6
        %v561 = vsel %vm401, %v560, %v559
        %v563 = vadd.f32 %v553, %v561
        %s564 = sld [smem:[#allocation3 + $0x55]]
        %v565 = vstv %s564
        %v566 = vmul.f32 %v370, %v565
        %v568 = vrot.slane %v566, 7
        %v569 = vrot.slane %v568, 2
        %570 = vrot.lane.b32.xlu0 %v569, 48
        %v571 = vpop.permute.xlu0 %570
        %v572 = vrot.slane %v571, 6
        %v573 = vsel %vm401, %v572, %v571
        %v575 = vadd.f32 %v563, %v573
        %s576 = sld [smem:[#allocation3 + $0x2b]]
        %v577 = vstv %s576
        %v578 = vmul.f32 %v370, %v577
        %580 = vrot.lane.b32.xlu0 %v578, 32
        %v581 = vpop.permute.xlu0 %580
        %v582 = vrot.slane %v581, 6
        %v583 = vsel %vm424, %v582, %v581
        %v585 = vadd.f32 %v575, %v583
        %s586 = sld [smem:[#allocation3 + $0x5c]]
        %v587 = vstv %s586
        %v588 = vmul.f32 %v370, %v587
        %v590 = vrot.slane %v588, 7
        %v591 = vrot.slane %v590, 2
        %592 = vrot.lane.b32.xlu0 %v591, 32
        %v593 = vpop.permute.xlu0 %592
        %v594 = vrot.slane %v593, 6
        %v595 = vsel %vm424, %v594, %v593
        %v597 = vadd.f32 %v585, %v595
        %s598 = scalar_lea.vmem [#allocation7], 1
        %v599 = vld [vmem:[%s598] ss:$8 sm:$0x3]
        %v602 = vunpack.c.l.s4 857870592
        %v603 = vunpack.c.0.s8 %v602
        %v604 = vperm.slane %v599, %v603
        %605 = vrot.lane.b32.xlu0 %v604, 78
        %v606 = vpop.permute.xlu0 %605
        %v607 = vrot.slane %v606, 6
        %vm608 = vcmask 637952
        %v609 = vsel %vm608, %v607, %v606
        %v611 = vmul.f32 %v597, %v609
        %613 = vrot.lane.b32.xlu0 %v611, 127
        %v614 = vpop.permute.xlu0 %613
        %v615 = vrot.slane %v614, 2
        %vm616 = vcmask 1039360
        %v617 = vsel %vm616, %v614, %v615
        %v619 = vadd.f32 %v453, %v617
        %s620 = sld [smem:[#allocation3 + $0x2]]
        %v621 = vstv %s620
        %v622 = vmul.f32 %v288, %v621
        %v623 = vadd.f32 %v622, 0.0
        %s624 = sld [smem:[#allocation3 + $0x33]]
        %v625 = vstv %s624
        %v626 = vmul.f32 %v288, %v625
        %v628 = vrot.slane %v626, 7
        %v629 = vrot.slane %v628, 2
        %v631 = vadd.f32 %v623, %v629
        %s632 = sld [smem:[#allocation3 + $0x9]]
        %v633 = vstv %s632
        %v634 = vmul.f32 %v288, %v633
        %636 = vrot.lane.b32.xlu0 %v634, 112
        %v637 = vpop.permute.xlu0 %636
        %v638 = vrot.slane %v637, 2
        %v639 = vsel %vm308, %v637, %v638
        %v641 = vadd.f32 %v631, %v639
        %s642 = sld [smem:[#allocation3 + $0x3a]]
        %v643 = vstv %s642
        %v644 = vmul.f32 %v288, %v643
        %v646 = vrot.slane %v644, 7
        %v647 = vrot.slane %v646, 2
        %648 = vrot.lane.b32.xlu0 %v647, 112
        %v649 = vpop.permute.xlu0 %648
        %v650 = vrot.slane %v649, 2
        %v651 = vsel %vm308, %v649, %v650
        %v653 = vadd.f32 %v641, %v651
        %s654 = sld [smem:[#allocation3 + $0x10]]
        %v655 = vstv %s654
        %v656 = vmul.f32 %v288, %v655
        %658 = vrot.lane.b32.xlu0 %v656, 96
        %v659 = vpop.permute.xlu0 %658
        %v660 = vrot.slane %v659, 2
        %v661 = vsel %vm331, %v659, %v660
        %v663 = vadd.f32 %v653, %v661
        %s664 = sld [smem:[#allocation3 + $0x41]]
        %v665 = vstv %s664
        %v666 = vmul.f32 %v288, %v665
        %v668 = vrot.slane %v666, 7
        %v669 = vrot.slane %v668, 2
        %670 = vrot.lane.b32.xlu0 %v669, 96
        %v671 = vpop.permute.xlu0 %670
        %v672 = vrot.slane %v671, 2
        %v673 = vsel %vm331, %v671, %v672
        %v675 = vadd.f32 %v663, %v673
        %s676 = sld [smem:[#allocation3 + $0x17]]
        %v677 = vstv %s676
        %v678 = vmul.f32 %v288, %v677
        %680 = vrot.lane.b32.xlu0 %v678, 80
        %v681 = vpop.permute.xlu0 %680
        %v682 = vrot.slane %v681, 2
        %v683 = vsel %vm354, %v681, %v682
        %v685 = vadd.f32 %v675, %v683
        %s686 = sld [smem:[#allocation3 + $0x48]]
        %v687 = vstv %s686
        %v688 = vmul.f32 %v288, %v687
        %v690 = vrot.slane %v688, 7
        %v691 = vrot.slane %v690, 2
        %692 = vrot.lane.b32.xlu0 %v691, 80
        %v693 = vpop.permute.xlu0 %692
        %v694 = vrot.slane %v693, 2
        %v695 = vsel %vm354, %v693, %v694
        %v697 = vadd.f32 %v685, %v695
        %s698 = sld [smem:[#allocation3 + $0x1e]]
        %v699 = vstv %s698
        %v700 = vmul.f32 %v370, %v699
        %702 = vrot.lane.b32.xlu0 %v700, 64
        %v703 = vpop.permute.xlu0 %702
        %v704 = vrot.slane %v703, 6
        %v705 = vsel %vm378, %v704, %v703
        %v707 = vadd.f32 %v697, %v705
        %s708 = sld [smem:[#allocation3 + $0x4f]]
        %v709 = vstv %s708
        %v710 = vmul.f32 %v370, %v709
        %v712 = vrot.slane %v710, 7
        %v713 = vrot.slane %v712, 2
        %714 = vrot.lane.b32.xlu0 %v713, 64
        %v715 = vpop.permute.xlu0 %714
        %v716 = vrot.slane %v715, 6
        %v717 = vsel %vm378, %v716, %v715
        %v719 = vadd.f32 %v707, %v717
        %s720 = sld [smem:[#allocation3 + $0x25]]
        %v721 = vstv %s720
        %v722 = vmul.f32 %v370, %v721
        %724 = vrot.lane.b32.xlu0 %v722, 48
        %v725 = vpop.permute.xlu0 %724
        %v726 = vrot.slane %v725, 6
        %v727 = vsel %vm401, %v726, %v725
        %v729 = vadd.f32 %v719, %v727
        %s730 = sld [smem:[#allocation3 + $0x56]]
        %v731 = vstv %s730
        %v732 = vmul.f32 %v370, %v731
        %v734 = vrot.slane %v732, 7
        %v735 = vrot.slane %v734, 2
        %736 = vrot.lane.b32.xlu0 %v735, 48
        %v737 = vpop.permute.xlu0 %736
        %v738 = vrot.slane %v737, 6
        %v739 = vsel %vm401, %v738, %v737
        %v741 = vadd.f32 %v729, %v739
        %s742 = sld [smem:[#allocation3 + $0x2c]]
        %v743 = vstv %s742
        %v744 = vmul.f32 %v370, %v743
        %746 = vrot.lane.b32.xlu0 %v744, 32
        %v747 = vpop.permute.xlu0 %746
        %v748 = vrot.slane %v747, 6
        %v749 = vsel %vm424, %v748, %v747
        %v751 = vadd.f32 %v741, %v749
        %s752 = sld [smem:[#allocation3 + $0x5d]]
        %v753 = vstv %s752
        %v754 = vmul.f32 %v370, %v753
        %v756 = vrot.slane %v754, 7
        %v757 = vrot.slane %v756, 2
        %758 = vrot.lane.b32.xlu0 %v757, 32
        %v759 = vpop.permute.xlu0 %758
        %v760 = vrot.slane %v759, 6
        %v761 = vsel %vm424, %v760, %v759
        %v763 = vadd.f32 %v751, %v761
        %s764 = scalar_lea.vmem [#allocation7], 2
        %v765 = vld [vmem:[%s764] ss:$8 sm:$0x3]
        %v768 = vunpack.c.l.s4 857870592
        %v769 = vunpack.c.0.s8 %v768
        %v770 = vperm.slane %v765, %v769
        %771 = vrot.lane.b32.xlu0 %v770, 79
        %v772 = vpop.permute.xlu0 %771
        %v773 = vrot.slane %v772, 6
        %vm774 = vcmask 646144
        %v775 = vsel %vm774, %v773, %v772
        %v777 = vmul.f32 %v763, %v775
        %779 = vrot.lane.b32.xlu0 %v777, 126
        %v780 = vpop.permute.xlu0 %779
        %v781 = vrot.slane %v780, 2
        %vm782 = vcmask 1031168
        %v783 = vsel %vm782, %v780, %v781
        %v785 = vadd.f32 %v619, %v783
        %s786 = sld [smem:[#allocation3 + $0x3]]
        %v787 = vstv %s786
        %v788 = vmul.f32 %v288, %v787
        %v789 = vadd.f32 %v788, 0.0
        %s790 = sld [smem:[#allocation3 + $0x34]]
        %v791 = vstv %s790
        %v792 = vmul.f32 %v288, %v791
        %v794 = vrot.slane %v792, 7
        %v795 = vrot.slane %v794, 2
        %v797 = vadd.f32 %v789, %v795
        %s798 = sld [smem:[#allocation3 + $0xa]]
        %v799 = vstv %s798
        %v800 = vmul.f32 %v288, %v799
        %802 = vrot.lane.b32.xlu0 %v800, 112
        %v803 = vpop.permute.xlu0 %802
        %v804 = vrot.slane %v803, 2
        %v805 = vsel %vm308, %v803, %v804
        %v807 = vadd.f32 %v797, %v805
        %s808 = sld [smem:[#allocation3 + $0x3b]]
        %v809 = vstv %s808
        %v810 = vmul.f32 %v288, %v809
        %v812 = vrot.slane %v810, 7
        %v813 = vrot.slane %v812, 2
        %814 = vrot.lane.b32.xlu0 %v813, 112
        %v815 = vpop.permute.xlu0 %814
        %v816 = vrot.slane %v815, 2
        %v817 = vsel %vm308, %v815, %v816
        %v819 = vadd.f32 %v807, %v817
        %s820 = sld [smem:[#allocation3 + $0x11]]
        %v821 = vstv %s820
        %v822 = vmul.f32 %v288, %v821
        %824 = vrot.lane.b32.xlu0 %v822, 96
        %v825 = vpop.permute.xlu0 %824
        %v826 = vrot.slane %v825, 2
        %v827 = vsel %vm331, %v825, %v826
        %v829 = vadd.f32 %v819, %v827
        %s830 = sld [smem:[#allocation3 + $0x42]]
        %v831 = vstv %s830
        %v832 = vmul.f32 %v288, %v831
        %v834 = vrot.slane %v832, 7
        %v835 = vrot.slane %v834, 2
        %836 = vrot.lane.b32.xlu0 %v835, 96
        %v837 = vpop.permute.xlu0 %836
        %v838 = vrot.slane %v837, 2
        %v839 = vsel %vm331, %v837, %v838
        %v841 = vadd.f32 %v829, %v839
        %v842 = vld [vmem:[#allocation2 + $0x2] sm:$0xf]
        %s843 = sld [smem:[#allocation3 + $0x18]]
        %v844 = vstv %s843
        %v845 = vmul.f32 %v842, %v844
        %847 = vrot.lane.b32.xlu0 %v845, 80
        %v848 = vpop.permute.xlu0 %847
        %v849 = vrot.slane %v848, 6
        %v850 = vsel %vm354, %v849, %v848
        %v852 = vadd.f32 %v841, %v850
        %s853 = sld [smem:[#allocation3 + $0x49]]
        %v854 = vstv %s853
        %v855 = vmul.f32 %v842, %v854
        %v857 = vrot.slane %v855, 7
        %v858 = vrot.slane %v857, 2
        %859 = vrot.lane.b32.xlu0 %v858, 80
        %v860 = vpop.permute.xlu0 %859
        %v861 = vrot.slane %v860, 6
        %v862 = vsel %vm354, %v861, %v860
        %v864 = vadd.f32 %v852, %v862
        %s865 = sld [smem:[#allocation3 + $0x1f]]
        %v866 = vstv %s865
        %v867 = vmul.f32 %v370, %v866
        %869 = vrot.lane.b32.xlu0 %v867, 64
        %v870 = vpop.permute.xlu0 %869
        %v871 = vrot.slane %v870, 6
        %v872 = vsel %vm378, %v871, %v870
        %v874 = vadd.f32 %v864, %v872
        %s875 = sld [smem:[#allocation3 + $0x50]]
        %v876 = vstv %s875
        %v877 = vmul.f32 %v370, %v876
        %v879 = vrot.slane %v877, 7
        %v880 = vrot.slane %v879, 2
        %881 = vrot.lane.b32.xlu0 %v880, 64
        %v882 = vpop.permute.xlu0 %881
        %v883 = vrot.slane %v882, 6
        %v884 = vsel %vm378, %v883, %v882
        %v886 = vadd.f32 %v874, %v884
        %s887 = sld [smem:[#allocation3 + $0x26]]
        %v888 = vstv %s887
        %v889 = vmul.f32 %v370, %v888
        %891 = vrot.lane.b32.xlu0 %v889, 48
        %v892 = vpop.permute.xlu0 %891
        %v893 = vrot.slane %v892, 6
        %v894 = vsel %vm401, %v893, %v892
        %v896 = vadd.f32 %v886, %v894
        %s897 = sld [smem:[#allocation3 + $0x57]]
        %v898 = vstv %s897
        %v899 = vmul.f32 %v370, %v898
        %v901 = vrot.slane %v899, 7
        %v902 = vrot.slane %v901, 2
        %903 = vrot.lane.b32.xlu0 %v902, 48
        %v904 = vpop.permute.xlu0 %903
        %v905 = vrot.slane %v904, 6
        %v906 = vsel %vm401, %v905, %v904
        %v908 = vadd.f32 %v896, %v906
        %s909 = sld [smem:[#allocation3 + $0x2d]]
        %v910 = vstv %s909
        %v911 = vmul.f32 %v370, %v910
        %913 = vrot.lane.b32.xlu0 %v911, 32
        %v914 = vpop.permute.xlu0 %913
        %v915 = vrot.slane %v914, 6
        %v916 = vsel %vm424, %v915, %v914
        %v918 = vadd.f32 %v908, %v916
        %s919 = sld [smem:[#allocation3 + $0x5e]]
        %v920 = vstv %s919
        %v921 = vmul.f32 %v370, %v920
        %v923 = vrot.slane %v921, 7
        %v924 = vrot.slane %v923, 2
        %925 = vrot.lane.b32.xlu0 %v924, 32
        %v926 = vpop.permute.xlu0 %925
        %v927 = vrot.slane %v926, 6
        %v928 = vsel %vm424, %v927, %v926
        %v930 = vadd.f32 %v918, %v928
        %s931 = scalar_lea.vmem [#allocation7], 3
        %v932 = vld [vmem:[%s931] ss:$8 sm:$0x3]
        %v935 = vunpack.c.l.s4 857870592
        %v936 = vunpack.c.0.s8 %v935
        %v937 = vperm.slane %v932, %v936
        %938 = vrot.lane.b32.xlu0 %v937, 80
        %v939 = vpop.permute.xlu0 %938
        %v940 = vrot.slane %v939, 6
        %v941 = vsel %vm354, %v940, %v939
        %v943 = vmul.f32 %v930, %v941
        %945 = vrot.lane.b32.xlu0 %v943, 125
        %v946 = vpop.permute.xlu0 %945
        %v947 = vrot.slane %v946, 2
        %vm948 = vcmask 1022976
        %v949 = vsel %vm948, %v946, %v947
        %v951 = vadd.f32 %v785, %v949
        %s952 = sld [smem:[#allocation3 + $0x4]]
        %v953 = vstv %s952
        %v954 = vmul.f32 %v288, %v953
        %v955 = vadd.f32 %v954, 0.0
        %s956 = sld [smem:[#allocation3 + $0x35]]
        %v957 = vstv %s956
        %v958 = vmul.f32 %v288, %v957
        %v960 = vrot.slane %v958, 7
        %v961 = vrot.slane %v960, 2
        %v963 = vadd.f32 %v955, %v961
        %s964 = sld [smem:[#allocation3 + $0xb]]
        %v965 = vstv %s964
        %v966 = vmul.f32 %v288, %v965
        %968 = vrot.lane.b32.xlu0 %v966, 112
        %v969 = vpop.permute.xlu0 %968
        %v970 = vrot.slane %v969, 2
        %v971 = vsel %vm308, %v969, %v970
        %v973 = vadd.f32 %v963, %v971
        %s974 = sld [smem:[#allocation3 + $0x3c]]
        %v975 = vstv %s974
        %v976 = vmul.f32 %v288, %v975
        %v978 = vrot.slane %v976, 7
        %v979 = vrot.slane %v978, 2
        %980 = vrot.lane.b32.xlu0 %v979, 112
        %v981 = vpop.permute.xlu0 %980
        %v982 = vrot.slane %v981, 2
        %v983 = vsel %vm308, %v981, %v982
        %v985 = vadd.f32 %v973, %v983
        %s986 = sld [smem:[#allocation3 + $0x12]]
        %v987 = vstv %s986
        %v988 = vmul.f32 %v288, %v987
        %990 = vrot.lane.b32.xlu0 %v988, 96
        %v991 = vpop.permute.xlu0 %990
        %v992 = vrot.slane %v991, 2
        %v993 = vsel %vm331, %v991, %v992
        %v995 = vadd.f32 %v985, %v993
        %s996 = sld [smem:[#allocation3 + $0x43]]
        %v997 = vstv %s996
        %v998 = vmul.f32 %v288, %v997
        %v1000 = vrot.slane %v998, 7
        %v1001 = vrot.slane %v1000, 2
        %1002 = vrot.lane.b32.xlu0 %v1001, 96
        %v1003 = vpop.permute.xlu0 %1002
        %v1004 = vrot.slane %v1003, 2
        %v1005 = vsel %vm331, %v1003, %v1004
        %v1007 = vadd.f32 %v995, %v1005
        %s1008 = sld [smem:[#allocation3 + $0x19]]
        %v1009 = vstv %s1008
        %v1010 = vmul.f32 %v370, %v1009
        %1012 = vrot.lane.b32.xlu0 %v1010, 80
        %v1013 = vpop.permute.xlu0 %1012
        %v1014 = vrot.slane %v1013, 6
        %v1015 = vsel %vm354, %v1014, %v1013
        %v1017 = vadd.f32 %v1007, %v1015
        %s1018 = sld [smem:[#allocation3 + $0x4a]]
        %v1019 = vstv %s1018
        %v1020 = vmul.f32 %v370, %v1019
        %v1022 = vrot.slane %v1020, 7
        %v1023 = vrot.slane %v1022, 2
        %1024 = vrot.lane.b32.xlu0 %v1023, 80
        %v1025 = vpop.permute.xlu0 %1024
        %v1026 = vrot.slane %v1025, 6
        %v1027 = vsel %vm354, %v1026, %v1025
        %v1029 = vadd.f32 %v1017, %v1027
        %s1030 = sld [smem:[#allocation3 + $0x20]]
        %v1031 = vstv %s1030
        %v1032 = vmul.f32 %v370, %v1031
        %1034 = vrot.lane.b32.xlu0 %v1032, 64
        %v1035 = vpop.permute.xlu0 %1034
        %v1036 = vrot.slane %v1035, 6
        %v1037 = vsel %vm378, %v1036, %v1035
        %v1039 = vadd.f32 %v1029, %v1037
        %s1040 = sld [smem:[#allocation3 + $0x51]]
        %v1041 = vstv %s1040
        %v1042 = vmul.f32 %v370, %v1041
        %v1044 = vrot.slane %v1042, 7
        %v1045 = vrot.slane %v1044, 2
        %1046 = vrot.lane.b32.xlu0 %v1045, 64
        %v1047 = vpop.permute.xlu0 %1046
        %v1048 = vrot.slane %v1047, 6
        %v1049 = vsel %vm378, %v1048, %v1047
        %v1051 = vadd.f32 %v1039, %v1049
        %s1052 = sld [smem:[#allocation3 + $0x27]]
        %v1053 = vstv %s1052
        %v1054 = vmul.f32 %v370, %v1053
        %1056 = vrot.lane.b32.xlu0 %v1054, 48
        %v1057 = vpop.permute.xlu0 %1056
        %v1058 = vrot.slane %v1057, 6
        %v1059 = vsel %vm401, %v1058, %v1057
        %v1061 = vadd.f32 %v1051, %v1059
        %s1062 = sld [smem:[#allocation3 + $0x58]]
        %v1063 = vstv %s1062
        %v1064 = vmul.f32 %v370, %v1063
        %v1066 = vrot.slane %v1064, 7
        %v1067 = vrot.slane %v1066, 2
        %1068 = vrot.lane.b32.xlu0 %v1067, 48
        %v1069 = vpop.permute.xlu0 %1068
        %v1070 = vrot.slane %v1069, 6
        %v1071 = vsel %vm401, %v1070, %v1069
        %v1073 = vadd.f32 %v1061, %v1071
        %s1074 = sld [smem:[#allocation3 + $0x2e]]
        %v1075 = vstv %s1074
        %v1076 = vmul.f32 %v370, %v1075
        %1078 = vrot.lane.b32.xlu0 %v1076, 32
        %v1079 = vpop.permute.xlu0 %1078
        %v1080 = vrot.slane %v1079, 6
        %v1081 = vsel %vm424, %v1080, %v1079
        %v1083 = vadd.f32 %v1073, %v1081
        %s1084 = sld [smem:[#allocation3 + $0x5f]]
        %v1085 = vstv %s1084
        %v1086 = vmul.f32 %v370, %v1085
        %v1088 = vrot.slane %v1086, 7
        %v1089 = vrot.slane %v1088, 2
        %1090 = vrot.lane.b32.xlu0 %v1089, 32
        %v1091 = vpop.permute.xlu0 %1090
        %v1092 = vrot.slane %v1091, 6
        %v1093 = vsel %vm424, %v1092, %v1091
        %v1095 = vadd.f32 %v1083, %v1093
        %s1096 = scalar_lea.vmem [#allocation7], 4
        %v1097 = vld [vmem:[%s1096] ss:$8 sm:$0x3]
        %v1100 = vunpack.c.l.s4 857870592
        %v1101 = vunpack.c.0.s8 %v1100
        %v1102 = vperm.slane %v1097, %v1101
        %1103 = vrot.lane.b32.xlu0 %v1102, 81
        %v1104 = vpop.permute.xlu0 %1103
        %v1105 = vrot.slane %v1104, 6
        %vm1106 = vcmask 662528
        %v1107 = vsel %vm1106, %v1105, %v1104
        %v1109 = vmul.f32 %v1095, %v1107
        %1111 = vrot.lane.b32.xlu0 %v1109, 124
        %v1112 = vpop.permute.xlu0 %1111
        %v1113 = vrot.slane %v1112, 2
        %vm1114 = vcmask 1014784
        %v1115 = vsel %vm1114, %v1112, %v1113
        %v1117 = vadd.f32 %v951, %v1115
        %s1118 = sld [smem:[#allocation3 + $0x5]]
        %v1119 = vstv %s1118
        %v1120 = vmul.f32 %v288, %v1119
        %v1121 = vadd.f32 %v1120, 0.0
        %s1122 = sld [smem:[#allocation3 + $0x36]]
        %v1123 = vstv %s1122
        %v1124 = vmul.f32 %v288, %v1123
        %v1126 = vrot.slane %v1124, 7
        %v1127 = vrot.slane %v1126, 2
        %v1129 = vadd.f32 %v1121, %v1127
        %s1130 = sld [smem:[#allocation3 + $0xc]]
        %v1131 = vstv %s1130
        %v1132 = vmul.f32 %v288, %v1131
        %1134 = vrot.lane.b32.xlu0 %v1132, 112
        %v1135 = vpop.permute.xlu0 %1134
        %v1136 = vrot.slane %v1135, 2
        %v1137 = vsel %vm308, %v1135, %v1136
        %v1139 = vadd.f32 %v1129, %v1137
        %s1140 = sld [smem:[#allocation3 + $0x3d]]
        %v1141 = vstv %s1140
        %v1142 = vmul.f32 %v288, %v1141
        %v1144 = vrot.slane %v1142, 7
        %v1145 = vrot.slane %v1144, 2
        %1146 = vrot.lane.b32.xlu0 %v1145, 112
        %v1147 = vpop.permute.xlu0 %1146
        %v1148 = vrot.slane %v1147, 2
        %v1149 = vsel %vm308, %v1147, %v1148
        %v1151 = vadd.f32 %v1139, %v1149
        %s1152 = sld [smem:[#allocation3 + $0x13]]
        %v1153 = vstv %s1152
        %v1154 = vmul.f32 %v288, %v1153
        %1156 = vrot.lane.b32.xlu0 %v1154, 96
        %v1157 = vpop.permute.xlu0 %1156
        %v1158 = vrot.slane %v1157, 2
        %v1159 = vsel %vm331, %v1157, %v1158
        %v1161 = vadd.f32 %v1151, %v1159
        %s1162 = sld [smem:[#allocation3 + $0x44]]
        %v1163 = vstv %s1162
        %v1164 = vmul.f32 %v288, %v1163
        %v1166 = vrot.slane %v1164, 7
        %v1167 = vrot.slane %v1166, 2
        %1168 = vrot.lane.b32.xlu0 %v1167, 96
        %v1169 = vpop.permute.xlu0 %1168
        %v1170 = vrot.slane %v1169, 2
        %v1171 = vsel %vm331, %v1169, %v1170
        %v1173 = vadd.f32 %v1161, %v1171
        %s1174 = sld [smem:[#allocation3 + $0x1a]]
        %v1175 = vstv %s1174
        %v1176 = vmul.f32 %v370, %v1175
        %1178 = vrot.lane.b32.xlu0 %v1176, 80
        %v1179 = vpop.permute.xlu0 %1178
        %v1180 = vrot.slane %v1179, 6
        %v1181 = vsel %vm354, %v1180, %v1179
        %v1183 = vadd.f32 %v1173, %v1181
        %s1184 = sld [smem:[#allocation3 + $0x4b]]
        %v1185 = vstv %s1184
        %v1186 = vmul.f32 %v370, %v1185
        %v1188 = vrot.slane %v1186, 7
        %v1189 = vrot.slane %v1188, 2
        %1190 = vrot.lane.b32.xlu0 %v1189, 80
        %v1191 = vpop.permute.xlu0 %1190
        %v1192 = vrot.slane %v1191, 6
        %v1193 = vsel %vm354, %v1192, %v1191
        %v1195 = vadd.f32 %v1183, %v1193
        %s1196 = sld [smem:[#allocation3 + $0x21]]
        %v1197 = vstv %s1196
        %v1198 = vmul.f32 %v370, %v1197
        %1200 = vrot.lane.b32.xlu0 %v1198, 64
        %v1201 = vpop.permute.xlu0 %1200
        %v1202 = vrot.slane %v1201, 6
        %v1203 = vsel %vm378, %v1202, %v1201
        %v1205 = vadd.f32 %v1195, %v1203
        %s1206 = sld [smem:[#allocation3 + $0x52]]
        %v1207 = vstv %s1206
        %v1208 = vmul.f32 %v370, %v1207
        %v1210 = vrot.slane %v1208, 7
        %v1211 = vrot.slane %v1210, 2
        %1212 = vrot.lane.b32.xlu0 %v1211, 64
        %v1213 = vpop.permute.xlu0 %1212
        %v1214 = vrot.slane %v1213, 6
        %v1215 = vsel %vm378, %v1214, %v1213
        %v1217 = vadd.f32 %v1205, %v1215
        %s1218 = sld [smem:[#allocation3 + $0x28]]
        %v1219 = vstv %s1218
        %v1220 = vmul.f32 %v370, %v1219
        %1222 = vrot.lane.b32.xlu0 %v1220, 48
        %v1223 = vpop.permute.xlu0 %1222
        %v1224 = vrot.slane %v1223, 6
        %v1225 = vsel %vm401, %v1224, %v1223
        %v1227 = vadd.f32 %v1217, %v1225
        %s1228 = sld [smem:[#allocation3 + $0x59]]
        %v1229 = vstv %s1228
        %v1230 = vmul.f32 %v370, %v1229
        %v1232 = vrot.slane %v1230, 7
        %v1233 = vrot.slane %v1232, 2
        %1234 = vrot.lane.b32.xlu0 %v1233, 48
        %v1235 = vpop.permute.xlu0 %1234
        %v1236 = vrot.slane %v1235, 6
        %v1237 = vsel %vm401, %v1236, %v1235
        %v1239 = vadd.f32 %v1227, %v1237
        %s1240 = sld [smem:[#allocation3 + $0x2f]]
        %v1241 = vstv %s1240
        %v1242 = vmul.f32 %v370, %v1241
        %1244 = vrot.lane.b32.xlu0 %v1242, 32
        %v1245 = vpop.permute.xlu0 %1244
        %v1246 = vrot.slane %v1245, 6
        %v1247 = vsel %vm424, %v1246, %v1245
        %v1249 = vadd.f32 %v1239, %v1247
        %s1250 = sld [smem:[#allocation3 + $0x60]]
        %v1251 = vstv %s1250
        %v1252 = vmul.f32 %v370, %v1251
        %v1254 = vrot.slane %v1252, 7
        %v1255 = vrot.slane %v1254, 2
        %1256 = vrot.lane.b32.xlu0 %v1255, 32
        %v1257 = vpop.permute.xlu0 %1256
        %v1258 = vrot.slane %v1257, 6
        %v1259 = vsel %vm424, %v1258, %v1257
        %v1261 = vadd.f32 %v1249, %v1259
        %s1262 = scalar_lea.vmem [#allocation7], 5
        %v1263 = vld [vmem:[%s1262] ss:$8 sm:$0x3]
        %v1266 = vunpack.c.l.s4 857870592
        %v1267 = vunpack.c.0.s8 %v1266
        %v1268 = vperm.slane %v1263, %v1267
        %1269 = vrot.lane.b32.xlu0 %v1268, 82
        %v1270 = vpop.permute.xlu0 %1269
        %v1271 = vrot.slane %v1270, 6
        %vm1272 = vcmask 670720
        %v1273 = vsel %vm1272, %v1271, %v1270
        %v1275 = vmul.f32 %v1261, %v1273
        %1277 = vrot.lane.b32.xlu0 %v1275, 123
        %v1278 = vpop.permute.xlu0 %1277
        %v1279 = vrot.slane %v1278, 2
        %vm1280 = vcmask 1006592
        %v1281 = vsel %vm1280, %v1278, %v1279
        %v1283 = vadd.f32 %v1117, %v1281
        %s1284 = sld [smem:[#allocation3 + $0x6]]
        %v1285 = vstv %s1284
        %v1286 = vmul.f32 %v288, %v1285
        %v1287 = vadd.f32 %v1286, 0.0
        %s1288 = sld [smem:[#allocation3 + $0x37]]
        %v1289 = vstv %s1288
        %v1290 = vmul.f32 %v288, %v1289
        %v1292 = vrot.slane %v1290, 7
        %v1293 = vrot.slane %v1292, 2
        %v1295 = vadd.f32 %v1287, %v1293
        %s1296 = sld [smem:[#allocation3 + $0xd]]
        %v1297 = vstv %s1296
        %v1298 = vmul.f32 %v288, %v1297
        %1300 = vrot.lane.b32.xlu0 %v1298, 112
        %v1301 = vpop.permute.xlu0 %1300
        %v1302 = vrot.slane %v1301, 2
        %v1303 = vsel %vm308, %v1301, %v1302
        %v1305 = vadd.f32 %v1295, %v1303
        %s1306 = sld [smem:[#allocation3 + $0x3e]]
        %v1307 = vstv %s1306
        %v1308 = vmul.f32 %v288, %v1307
        %v1310 = vrot.slane %v1308, 7
        %v1311 = vrot.slane %v1310, 2
        %1312 = vrot.lane.b32.xlu0 %v1311, 112
        %v1313 = vpop.permute.xlu0 %1312
        %v1314 = vrot.slane %v1313, 2
        %v1315 = vsel %vm308, %v1313, %v1314
        %v1317 = vadd.f32 %v1305, %v1315
        %s1318 = sld [smem:[#allocation3 + $0x14]]
        %v1319 = vstv %s1318
        %v1320 = vmul.f32 %v288, %v1319
        %1322 = vrot.lane.b32.xlu0 %v1320, 96
        %v1323 = vpop.permute.xlu0 %1322
        %v1324 = vrot.slane %v1323, 2
        %v1325 = vsel %vm331, %v1323, %v1324
        %v1327 = vadd.f32 %v1317, %v1325
        %s1328 = sld [smem:[#allocation3 + $0x45]]
        %v1329 = vstv %s1328
        %v1330 = vmul.f32 %v288, %v1329
        %v1332 = vrot.slane %v1330, 7
        %v1333 = vrot.slane %v1332, 2
        %1334 = vrot.lane.b32.xlu0 %v1333, 96
        %v1335 = vpop.permute.xlu0 %1334
        %v1336 = vrot.slane %v1335, 2
        %v1337 = vsel %vm331, %v1335, %v1336
        %v1339 = vadd.f32 %v1327, %v1337
        %s1340 = sld [smem:[#allocation3 + $0x1b]]
        %v1341 = vstv %s1340
        %v1342 = vmul.f32 %v370, %v1341
        %1344 = vrot.lane.b32.xlu0 %v1342, 80
        %v1345 = vpop.permute.xlu0 %1344
        %v1346 = vrot.slane %v1345, 6
        %v1347 = vsel %vm354, %v1346, %v1345
        %v1349 = vadd.f32 %v1339, %v1347
        %s1350 = sld [smem:[#allocation3 + $0x4c]]
        %v1351 = vstv %s1350
        %v1352 = vmul.f32 %v370, %v1351
        %v1354 = vrot.slane %v1352, 7
        %v1355 = vrot.slane %v1354, 2
        %1356 = vrot.lane.b32.xlu0 %v1355, 80
        %v1357 = vpop.permute.xlu0 %1356
        %v1358 = vrot.slane %v1357, 6
        %v1359 = vsel %vm354, %v1358, %v1357
        %v1361 = vadd.f32 %v1349, %v1359
        %s1362 = sld [smem:[#allocation3 + $0x22]]
        %v1363 = vstv %s1362
        %v1364 = vmul.f32 %v370, %v1363
        %1366 = vrot.lane.b32.xlu0 %v1364, 64
        %v1367 = vpop.permute.xlu0 %1366
        %v1368 = vrot.slane %v1367, 6
        %v1369 = vsel %vm378, %v1368, %v1367
        %v1371 = vadd.f32 %v1361, %v1369
        %s1372 = sld [smem:[#allocation3 + $0x53]]
        %v1373 = vstv %s1372
        %v1374 = vmul.f32 %v370, %v1373
        %v1376 = vrot.slane %v1374, 7
        %v1377 = vrot.slane %v1376, 2
        %1378 = vrot.lane.b32.xlu0 %v1377, 64
        %v1379 = vpop.permute.xlu0 %1378
        %v1380 = vrot.slane %v1379, 6
        %v1381 = vsel %vm378, %v1380, %v1379
        %v1383 = vadd.f32 %v1371, %v1381
        %s1384 = sld [smem:[#allocation3 + $0x29]]
        %v1385 = vstv %s1384
        %v1386 = vmul.f32 %v370, %v1385
        %1388 = vrot.lane.b32.xlu0 %v1386, 48
        %v1389 = vpop.permute.xlu0 %1388
        %v1390 = vrot.slane %v1389, 6
        %v1391 = vsel %vm401, %v1390, %v1389
        %v1393 = vadd.f32 %v1383, %v1391
        %s1394 = sld [smem:[#allocation3 + $0x5a]]
        %v1395 = vstv %s1394
        %v1396 = vmul.f32 %v370, %v1395
        %v1398 = vrot.slane %v1396, 7
        %v1399 = vrot.slane %v1398, 2
        %1400 = vrot.lane.b32.xlu0 %v1399, 48
        %v1401 = vpop.permute.xlu0 %1400
        %v1402 = vrot.slane %v1401, 6
        %v1403 = vsel %vm401, %v1402, %v1401
        %v1405 = vadd.f32 %v1393, %v1403
        %s1406 = sld [smem:[#allocation3 + $0x30]]
        %v1407 = vstv %s1406
        %v1408 = vmul.f32 %v370, %v1407
        %1410 = vrot.lane.b32.xlu0 %v1408, 32
        %v1411 = vpop.permute.xlu0 %1410
        %v1412 = vrot.slane %v1411, 6
        %v1413 = vsel %vm424, %v1412, %v1411
        %v1415 = vadd.f32 %v1405, %v1413
        %s1416 = sld [smem:[#allocation3 + $0x61]]
        %v1417 = vstv %s1416
        %v1418 = vmul.f32 %v370, %v1417
        %v1420 = vrot.slane %v1418, 7
        %v1421 = vrot.slane %v1420, 2
        %1422 = vrot.lane.b32.xlu0 %v1421, 32
        %v1423 = vpop.permute.xlu0 %1422
        %v1424 = vrot.slane %v1423, 6
        %v1425 = vsel %vm424, %v1424, %v1423
        %v1427 = vadd.f32 %v1415, %v1425
        %s1428 = scalar_lea.vmem [#allocation7], 6
        %v1429 = vld [vmem:[%s1428] ss:$8 sm:$0x3]
        %v1432 = vunpack.c.l.s4 857870592
        %v1433 = vunpack.c.0.s8 %v1432
        %v1434 = vperm.slane %v1429, %v1433
        %1435 = vrot.lane.b32.xlu0 %v1434, 83
        %v1436 = vpop.permute.xlu0 %1435
        %v1437 = vrot.slane %v1436, 6
        %vm1438 = vcmask 678912
        %v1439 = vsel %vm1438, %v1437, %v1436
        %v1441 = vmul.f32 %v1427, %v1439
        %1443 = vrot.lane.b32.xlu0 %v1441, 122
        %v1444 = vpop.permute.xlu0 %1443
        %v1445 = vrot.slane %v1444, 2
        %vm1446 = vcmask 998400
        %v1447 = vsel %vm1446, %v1444, %v1445
        %v1449 = vadd.f32 %v1283, %v1447
        %v1450 = vxor.u32 %v1449, 2147483648
        %v1451 = vmul.f32 %v1450, 1.442695
        %v1452 = vpow.pop %v1451
        %v1453 = vadd.f32 %v1452, 1.0
        %v1454 = vrcp.pop %v1453
        %v1455 = vmul.f32 %v1453, %v1454
        %v1456 = vsub.f32 1.0, %v1455
        %v1457 = vmul.f32 %v1454, %v1456
        %v1458 = vadd.f32 %v1454, %v1457
        %vm1459 = vweird.f32 %v1453
        %vm1460 = vweird.f32 %v1454
        %vm1461 = vmor %vm1459, %vm1460
        %v1462 = vsel %vm1461, %v1454, %v1458
        %v1463 = vand.u32 2147483647, %v1453
        %vm1464 = vcmp.eq.f32.partialorder %v1463, 8.507059e+37
        %v1465 = vand.u32 %v1453, 2147483648
        %v1466 = vor.u32 1.1754944e-38, %v1465
        %v1467 = vsel %vm1464, %v1466, %v1462
        %v1468 = vmul.f32 1.0, %v1467
        %v1469 = vld [vmem:[%s193] sm:$0xff]
        %v1471 = vperm.slane %v1468, 0
        %v1472 = vperm.slane %v1468, 2
        %v1473 = vperm.slane %v1468, 4
        %v1477 = vperm.slane %v1471, 0
        %v1478 = vperm.slane %v1472, 0
        %v1479 = vperm.slane %v1473, 0
        %v1483 = vrot.slane %v1478, 4
        %v1484 = vsel %vm226, %v1477, %v1483
        %1485 = vrot.lane.b32.xlu0 %v1484, 51
        %v1486 = vpop.permute.xlu0 %1485
        %1487 = vrot.lane.b32.xlu0 %v1479, 51
        %v1488 = vpop.permute.xlu0 %1487
        %v1489 = vrot.slane %v1486, 4
        %v1490 = vrot.slane %v1488, 4
        %v1491 = vsel %vm226, %v1489, %v1490
        %vm1492 = vcmask 416768
        %v1493 = vsel %vm1492, %v1486, %v1491
        %v1495 = vmul.f32 %v1469, %v1493
        %1496 = vst [vmem:[%s217] sm:$0xff] %v1495
        %s1497 = sand.u32 %s98, 1
        %s1498 = scalar_lea.sflag [#allocation5], %s1497
        %s1499 = sand.u32 %s98, 1
        %s1500 = smul.addr %s1499, 8
        %s1501 = scalar_lea.vmem [#allocation10], %s1500
        // Predicated region
        $region45: #{tpu_custom_call.1} parent=31 // pred_check
          %p1502 = pneg %p108
        $region46: #{tpu_custom_call.1} parent=31 // pred_check_branch
          %1504 = sbr.rel (%p1502) target = $region48
        $region47: #{tpu_custom_call.1} parent=31 // pred_region
          %1506 = vsyncadd %s1498, 0
          %s1507 = smul.addr %s22, 2
          %s1508 = smul.addr %s1507, 4
          %s1509 = scalar_lea.hbm %s3, %s1508
          %s1511 = sshll.u32 %s1501, 4
          %s1512 = int_to_ptr.vmem [resolvable:$true] %s1511
          %s1513 = sshll.u32 %s1509, 4
          %s1514 = int_to_ptr.hbm [resolvable:$true] %s1513
          %1516 = dma.vmem_to_hbm [thread:$0]  %s1512, 128, %s1514, %s1498
        $region48: #{tpu_custom_call.1} parent=31 // pred_fallthru
          _
      $region32: #{tpu_custom_call.1} parent=5 // pred_fallthru
        _
      %p1517 = scmp.le.s32.totalorder 2, %s17
      // Predicated region
      $region49: #{tpu_custom_call.1} parent=5 // pred_check
        %p1518 = pneg %p1517
      $region50: #{tpu_custom_call.1} parent=5 // pred_check_branch
        %1520 = sbr.rel (%p1518) target = $region52
      $region51: #{tpu_custom_call.1} parent=5 // pred_region
        %s1521 = ssub.s32 %s17, 2
        // Predicated region
        $region53: #{tpu_custom_call.1} parent=51 // pred_check
          %p1522 = pneg %p114
        $region54: #{tpu_custom_call.1} parent=51 // pred_check_branch
          %1524 = sbr.rel (%p1522) target = $region56
        $region55: #{tpu_custom_call.1} parent=51 // pred_region
          %s1525 = sand.u32 %s99, 1
          %s1526 = scalar_lea.sflag [#allocation5], %s1525
          %s1527 = sand.u32 %s99, 1
          %s1528 = smul.addr %s1527, 8
          %s1529 = scalar_lea.vmem [#allocation10], %s1528
          %1531 = dma.done %s1526, 128
        $region56: #{tpu_custom_call.1} parent=51 // pred_fallthru
          _
      $region52: #{tpu_custom_call.1} parent=5 // pred_fallthru
        _
    $region6: #{tpu_custom_call.1} parent=1 // loop_footer
      %s21 = sadd.s32 1, %s17
    $region7: #{tpu_custom_call.1} parent=1 // loop_footer_branch
      %16 = sbr.rel target = $region3
    $region8: #{tpu_custom_call.1} parent=1 // loop_exit
      _
    %1532 = vsyncpa [#allocation4], 1
    %s1533 = scalar_lea.sflag [#allocation4], 1
    %1534 = vsyncpa %s1533, 1
    %1535 = vsyncpa [#allocation9], 1
    %s1536 = scalar_lea.sflag [#allocation9], 1
    %1537 = vsyncpa %s1536, 1
    %1538 = vsyncpa [#allocation5], 1
    %s1539 = scalar_lea.sflag [#allocation5], 1
    %1540 = vsyncpa %s1539, 1
    %1541 = vsyncpa [#allocation6], 1
    %s1542 = scalar_lea.sflag [#allocation6], 1
    %1543 = vsyncpa %s1542, 1

</llo_original>
